<compile_context>
chip_gen: v5e
topology: v5e:2x2
jax: 0.10.0
libtpu: 0.0.40
codegen_flags: <defaults>
</compile_context>

<pallas_src>
import functools

import jax
import jax.numpy as jnp
from jax.experimental import pallas as pl
from jax.experimental.pallas import tpu as pltpu


# ----------------------------------------------------------------------------
# Pallas kernel: full encoder stack.  Grid = (sequence blocks, layers).
# The output block (index depends only on axis 0) is the layer-to-layer carry.
# ----------------------------------------------------------------------------
def _encoder_kernel(x_ref, pe_ref, wqkv_ref, wo_ref, w1_ref, w2_ref,
                    ln_ref, bc_ref, b1_ref, o_ref,
                    *, heads, head_dim, tile_bn, T, C, mm_dtype):
    l = pl.program_id(1)

    # Load the activation block from HBM only for the first layer; afterwards it
    # stays resident in the output VMEM buffer (same block index across l).
    @pl.when(l == 0)
    def _():
        o_ref[...] = x_ref[...]

    R = tile_bn * T
    x = o_ref[...]                                      # (R, C) layer input (carry)
    pe = pe_ref[...]                                    # (T, C) temporal pos-emb

    # q_in = x + D_T  (positional embedding broadcast over the tile_bn sequences)
    q_in = (x.reshape(tile_bn, T, C) + pe[None, :, :]).reshape(R, C)

    # ---- fused QKV projection: one (R, C) @ (C, 3C) MXU pass (weights pre-cast) ----
    qkv = jnp.dot(q_in.astype(mm_dtype), wqkv_ref[...],
                  preferred_element_type=jnp.float32)
    q3 = qkv[:, 0 * C:1 * C].reshape(tile_bn, T, C)
    k3 = qkv[:, 1 * C:2 * C].reshape(tile_bn, T, C)
    v3 = qkv[:, 2 * C:3 * C].reshape(tile_bn, T, C)

    # ---- multi-head self-attention over T, batched over tile_bn sequences ----
    scale = 1.0 / jnp.sqrt(jnp.float32(head_dim))
    ctx_parts = []
    for h in range(heads):                              # small static unroll
        sl = slice(h * head_dim, (h + 1) * head_dim)
        qh = q3[:, :, sl].astype(mm_dtype)              # (tile_bn, T, d)
        kh = k3[:, :, sl].astype(mm_dtype)
        vh = v3[:, :, sl].astype(mm_dtype)
        s = jnp.einsum("bqd,bkd->bqk", qh, kh,
                       preferred_element_type=jnp.float32) * scale
        s = s - jnp.max(s, axis=-1, keepdims=True)      # stable softmax
        e = jnp.exp(s)
        p = e * pl.reciprocal(jnp.sum(e, axis=-1, keepdims=True), approx=True)
        ctx_parts.append(
            jnp.einsum("bqk,bkd->bqd", p.astype(mm_dtype), vh,
                       preferred_element_type=jnp.float32))
    ctx = jnp.concatenate(ctx_parts, axis=-1).reshape(R, C)

    bo = bc_ref[0:1, :]                                 # (1, C)
    b2 = bc_ref[1:2, :]                                 # (1, C)
    attn_out = jnp.dot(ctx.astype(mm_dtype), wo_ref[...],
                       preferred_element_type=jnp.float32) + bo

    def layernorm(v, g, b):
        mu = jnp.mean(v, axis=-1, keepdims=True)
        var = jnp.mean((v - mu) * (v - mu), axis=-1, keepdims=True)
        return (v - mu) * jax.lax.rsqrt(var + 1e-5) * g + b

    lnp = ln_ref[...]                                   # (6, C): ln1_g/b, ln2_g/b, lnL_g/b

    # ---- block norm1 + feed-forward + block norm2 ----
    x1 = layernorm(attn_out + q_in, lnp[0:1, :], lnp[1:2, :])
    hid = jnp.maximum(
        jnp.dot(x1.astype(mm_dtype), w1_ref[...],
                preferred_element_type=jnp.float32) + b1_ref[...],
        0.0)
    ff = jnp.dot(hid.astype(mm_dtype), w2_ref[...],
                 preferred_element_type=jnp.float32) + b2
    x2 = layernorm(ff + x1, lnp[2:3, :], lnp[3:4, :])

    # ---- outer (TTransformer_EncoderLayer) norm with residual to layer input ----
    out = layernorm(x2 + x, lnp[4:5, :], lnp[5:6, :])

    o_ref[...] = out                                    # carry to next layer; final
                                                        # layer's value is what Pallas
                                                        # writes back to HBM.


# ----------------------------------------------------------------------------
# Generation-aware sizing helpers
# ----------------------------------------------------------------------------
def _vmem_limit_bytes():
    """Scoped-VMEM budget: ~85% of physical capacity (>=8 MiB headroom)."""
    try:
        cap = int(pltpu.get_tpu_info().vmem_capacity_bytes)
    except Exception:
        cap = 64 * 1024 * 1024          # conservative (v7x-sized) fallback
    return int(min(cap - (8 << 20), int(cap * 0.85)))


def _auto_target_rows(T, C, F, mm_bytes, vmem_budget):
    """Rows-per-block target so 2x weight buffers + activation buffers fit VMEM."""
    w_mm = (4 * C * C + 2 * C * F) * mm_bytes            # wqkv + wo + w1 + w2
    w_f32 = (T * C + 8 * C + F) * 4                      # pos-emb, LN params, biases
    weights_vmem = 2 * (w_mm + w_f32)                    # double-buffered by pipeline
    # per-row activation footprint: x/out blocks (double-buffered, f32) +
    # qkv / hidden / ctx temporaries (f32) + mm_dtype operand copies
    per_row = (12 * C + 2 * F) * 4 + (4 * C + F) * mm_bytes
    avail = vmem_budget - weights_vmem - (8 << 20)       # compiler scratch headroom
    rows = max(64, avail // per_row) if avail > 0 else 64
    return int(min(4096, rows))


def _pick_tile_bn(BN, T, target_rows):
    """Largest divisor of BN with a sublane-aligned block, <= target_rows rows per
    block, preferring an EVEN number of blocks (v7x dual-core balance), then >= 2
    blocks, then any."""
    target = max(1, target_rows // max(T, 1))
    divs = [d for d in range(1, BN + 1)
            if BN % d == 0 and ((d * T) % 8 == 0 or d == BN)]

    def pick(cands):
        small = [d for d in cands if d <= target]
        return max(small) if small else min(cands)

    even = [d for d in divs if (BN // d) % 2 == 0]
    multi = [d for d in divs if BN // d >= 2]
    for cands in (even, multi, divs):
        if cands:
            return pick(cands)
    return BN


# ----------------------------------------------------------------------------
# Wrapper: packs per-layer params on a leading L axis and launches one fused call.
# ----------------------------------------------------------------------------
def t_transformer_block(src, layers, *, heads, tile_bn=None,
                        mm_dtype=jnp.bfloat16):
    B, N, T, C = src.shape
    BN = B * N
    L = len(layers)
    F = layers[0]["w1"].shape[1]
    head_dim = C // heads
    assert head_dim * heads == C

    mm_bytes = jnp.dtype(mm_dtype).itemsize
    vmem_limit = _vmem_limit_bytes()

    if tile_bn is None:
        tile_bn = _pick_tile_bn(BN, T, _auto_target_rows(T, C, F, mm_bytes, vmem_limit))
    assert BN % tile_bn == 0
    R = tile_bn * T

    x = src.astype(jnp.float32).reshape(BN * T, C)

    # Stack per-layer parameters along a leading L axis.  Matmul weights are cast
    # to mm_dtype HERE so the HBM weight stream and VMEM weight buffers are halved.
    pe_all = jnp.stack([p["pos_emb"][:T] for p in layers])                # (L, T, C)
    wqkv = jnp.stack([jnp.concatenate([p["wq"], p["wk"], p["wv"]], axis=1)
                      for p in layers]).astype(mm_dtype)                  # (L, C, 3C)
    wo = jnp.stack([p["wo"] for p in layers]).astype(mm_dtype)            # (L, C, C)
    w1 = jnp.stack([p["w1"] for p in layers]).astype(mm_dtype)            # (L, C, F)
    w2 = jnp.stack([p["w2"] for p in layers]).astype(mm_dtype)            # (L, F, C)
    ln = jnp.stack([jnp.concatenate([p["ln1_g"], p["ln1_b"],
                                     p["ln2_g"], p["ln2_b"],
                                     p["lnL_g"], p["lnL_b"]], axis=0)
                    for p in layers])                                     # (L, 6, C)
    bias_c = jnp.stack([jnp.concatenate([p["bo"], p["b2"]], axis=0)
                        for p in layers])                                 # (L, 2, C)
    b1 = jnp.stack([p["b1"] for p in layers])                             # (L, 1, F)

    in_specs = [
        pl.BlockSpec((R, C), lambda i, l: (i, 0)),                # x (resident over l)
        pl.BlockSpec((None, T, C), lambda i, l: (l, 0, 0)),       # pos emb
        pl.BlockSpec((None, C, 3 * C), lambda i, l: (l, 0, 0)),   # wqkv (mm_dtype)
        pl.BlockSpec((None, C, C), lambda i, l: (l, 0, 0)),       # wo   (mm_dtype)
        pl.BlockSpec((None, C, F), lambda i, l: (l, 0, 0)),       # w1   (mm_dtype)
        pl.BlockSpec((None, F, C), lambda i, l: (l, 0, 0)),       # w2   (mm_dtype)
        pl.BlockSpec((None, 6, C), lambda i, l: (l, 0, 0)),       # ln gammas/betas
        pl.BlockSpec((None, 2, C), lambda i, l: (l, 0, 0)),       # bo, b2
        pl.BlockSpec((None, 1, F), lambda i, l: (l, 0, 0)),       # b1
    ]
    out_spec = pl.BlockSpec((R, C), lambda i, l: (i, 0))          # resident over l

    kernel = functools.partial(_encoder_kernel, heads=heads, head_dim=head_dim,
                               tile_bn=tile_bn, T=T, C=C, mm_dtype=mm_dtype)

    out = pl.pallas_call(
        kernel,
        out_shape=jax.ShapeDtypeStruct((BN * T, C), jnp.float32),
        grid=(BN // tile_bn, L),
        in_specs=in_specs,
        out_specs=out_spec,
        compiler_params=pltpu.CompilerParams(
            dimension_semantics=("parallel", "arbitrary"),
            vmem_limit_bytes=vmem_limit),
    )(x, pe_all, wqkv, wo, w1, w2, ln, bias_c, b1)

    return out.reshape(B, N, T, C)


# ----------------------------------------------------------------------------
# Parameter construction (deterministic, synthetic)
# ----------------------------------------------------------------------------
def init_params(key, *, embed_size, num_layers, pe_length, forward_expansion):
    C, F = embed_size, forward_expansion * embed_size
    layers = []
    for _ in range(num_layers):
        key, *ks = jax.random.split(key, 8)
        layers.append(dict(
            pos_emb=jax.random.normal(ks[0], (pe_length, C), jnp.float32) * 0.02,
            # weights stored pre-transposed so the kernel does x @ W
            wq=jax.random.normal(ks[1], (C, C), jnp.float32) * 0.05,
            wk=jax.random.normal(ks[2], (C, C), jnp.float32) * 0.05,
            wv=jax.random.normal(ks[3], (C, C), jnp.float32) * 0.05,
            wo=jax.random.normal(ks[4], (C, C), jnp.float32) * 0.05,
            bo=jnp.zeros((1, C), jnp.float32),
            ln1_g=jnp.ones((1, C), jnp.float32), ln1_b=jnp.zeros((1, C), jnp.float32),
            ln2_g=jnp.ones((1, C), jnp.float32), ln2_b=jnp.zeros((1, C), jnp.float32),
            lnL_g=jnp.ones((1, C), jnp.float32), lnL_b=jnp.zeros((1, C), jnp.float32),
            w1=jax.random.normal(ks[5], (C, F), jnp.float32) * 0.05,
            b1=jnp.zeros((1, F), jnp.float32),
            w2=jax.random.normal(ks[6], (F, C), jnp.float32) * 0.05,
            b2=jnp.zeros((1, C), jnp.float32),
        ))
    return layers


# ----------------------------------------------------------------------------
# Pure-JAX reference (mirrors the PyTorch module, eval-mode dropout)
# ----------------------------------------------------------------------------
def _reference(src, layers, *, heads):
    B, N, T, C = src.shape
    d = C // heads

    def ln(v, g, b):
        mu = jnp.mean(v, -1, keepdims=True)
        var = jnp.mean((v - mu) ** 2, -1, keepdims=True)
        return (v - mu) / jnp.sqrt(var + 1e-5) * g[0] + b[0]

    x = src.astype(jnp.float32)
    for p in layers:
        pe = p["pos_emb"][:T]
        q_in = x + pe                                   # (B,N,T,C)
        Q = q_in @ p["wq"]; K = q_in @ p["wk"]; V = q_in @ p["wv"]
        Qh = Q.reshape(B, N, T, heads, d).transpose(0, 3, 1, 2, 4)
        Kh = K.reshape(B, N, T, heads, d).transpose(0, 3, 1, 2, 4)
        Vh = V.reshape(B, N, T, heads, d).transpose(0, 3, 1, 2, 4)
        s = jnp.einsum("bhntd,bhnsd->bhnts", Qh, Kh) / jnp.sqrt(jnp.float32(d))
        a = jax.nn.softmax(s, axis=-1)
        ctx = jnp.einsum("bhnts,bhnsd->bhntd", a, Vh)
        ctx = ctx.transpose(0, 2, 3, 1, 4).reshape(B, N, T, C)
        attn_out = ctx @ p["wo"] + p["bo"][0]
        x1 = ln(attn_out + q_in, p["ln1_g"], p["ln1_b"])
        ff = jnp.maximum(x1 @ p["w1"] + p["b1"][0], 0.0) @ p["w2"] + p["b2"][0]
        x2 = ln(ff + x1, p["ln2_g"], p["ln2_b"])
        x = ln(x2 + x, p["lnL_g"], p["lnL_b"])
    return x


# ----------------------------------------------------------------------------
if __name__ == "__main__":
    # small, forward-consistent shapes
    B, N, T, C = 2, 4, 8, 32
    heads, forward_expansion, num_layers, pe_length = 4, 2, 2, 8

    key = jax.random.PRNGKey(0)
    k_src, k_par = jax.random.split(key)
    src = jax.random.normal(k_src, (B, N, T, C), jnp.float32)
    layers = init_params(k_par, embed_size=C, num_layers=num_layers,
                         pe_length=pe_length, forward_expansion=forward_expansion)

    ref = _reference(src, layers, heads=heads)

    # f32 matmul path: tight correctness check vs the pure-JAX reference.
    out_f32 = jax.block_until_ready(
        t_transformer_block(src, layers, heads=heads, mm_dtype=jnp.float32))
    assert out_f32.shape == (B, N, T, C)
    max_err = float(jnp.max(jnp.abs(out_f32 - ref)))
    # tolerance 2e-3: approx-reciprocal softmax denominator (EUP vrcp) vs exact division
    assert jnp.allclose(out_f32, ref, rtol=2e-3, atol=2e-3), \
        f"f32 mismatch vs reference (max err {max_err})"

    # bf16-weight path (default performance configuration): wrapper-side pre-cast,
    # f32 accumulation; check it runs and agrees loosely with the f32 reference.
    out_bf16 = jax.block_until_ready(t_transformer_block(src, layers, heads=heads))
    assert out_bf16.shape == (B, N, T, C)
    assert bool(jnp.all(jnp.isfinite(out_bf16)))
    assert float(jnp.max(jnp.abs(out_bf16 - ref))) < 0.25

    print("KERNEL_OK")
</pallas_src>

<mosaic_0001>
module attributes {stable_mosaic.version = 11 : i64} {
  func.func @_encoder_kernel(%arg0: i32, %arg1: i32, %arg2: memref<32x32xf32, #tpu.memory_space<vmem>>, %arg3: memref<1x8x32xf32, #tpu.memory_space<vmem>>, %arg4: memref<1x32x96xf32, #tpu.memory_space<vmem>>, %arg5: memref<1x32x32xf32, #tpu.memory_space<vmem>>, %arg6: memref<1x32x64xf32, #tpu.memory_space<vmem>>, %arg7: memref<1x64x32xf32, #tpu.memory_space<vmem>>, %arg8: memref<1x6x32xf32, #tpu.memory_space<vmem>>, %arg9: memref<1x2x32xf32, #tpu.memory_space<vmem>>, %arg10: memref<1x1x64xf32, #tpu.memory_space<vmem>>, %arg11: memref<32x32xf32, #tpu.memory_space<vmem>>) attributes {dimension_semantics = [#tpu.dimension_semantics<parallel>, #tpu.dimension_semantics<arbitrary>], iteration_bounds = array<i64: 2, 2>, scalar_prefetch = 0 : i64, scratch_operands = 0 : i64, tpu.core_type = #tpu.core_type<tc>, window_params = [{transform_indices = @transform_0, window_bounds = array<i64: 32, 32>}, {transform_indices = @transform_1, window_bounds = array<i64: 1, 8, 32>}, {transform_indices = @transform_2, window_bounds = array<i64: 1, 32, 96>}, {transform_indices = @transform_3, window_bounds = array<i64: 1, 32, 32>}, {transform_indices = @transform_4, window_bounds = array<i64: 1, 32, 64>}, {transform_indices = @transform_5, window_bounds = array<i64: 1, 64, 32>}, {transform_indices = @transform_6, window_bounds = array<i64: 1, 6, 32>}, {transform_indices = @transform_7, window_bounds = array<i64: 1, 2, 32>}, {transform_indices = @transform_8, window_bounds = array<i64: 1, 1, 64>}, {transform_indices = @transform_9, window_bounds = array<i64: 32, 32>}]} {
    %c0_i32 = arith.constant 0 : i32
    %0 = arith.cmpi eq, %arg1, %c0_i32 : i32
    %1 = arith.extui %0 : i1 to i32
    %c0_i32_0 = arith.constant 0 : i32
    %2 = arith.cmpi ne, %1, %c0_i32_0 : i32
    scf.if %2 {
      %c0_67 = arith.constant 0 : index
      %c0_68 = arith.constant 0 : index
      %199 = vector.load %arg2[%c0_67, %c0_68] : memref<32x32xf32, #tpu.memory_space<vmem>>, vector<32x32xf32>
      %c0_69 = arith.constant 0 : index
      %c0_70 = arith.constant 0 : index
      %200 = vector.load %arg11[%c0_69, %c0_70] : memref<32x32xf32, #tpu.memory_space<vmem>>, vector<32x32xf32>
      tpu.vector_store %arg11[%c0_69, %c0_70], %199 {strides = array<i32>} : memref<32x32xf32, #tpu.memory_space<vmem>>, vector<32x32xf32>,
    } else {
    }
    %c0 = arith.constant 0 : index
    %c0_1 = arith.constant 0 : index
    %3 = vector.load %arg11[%c0, %c0_1] : memref<32x32xf32, #tpu.memory_space<vmem>>, vector<32x32xf32>
    %c0_2 = arith.constant 0 : index
    %c0_3 = arith.constant 0 : index
    %c0_4 = arith.constant 0 : index
    %4 = vector.load %arg3[%c0_2, %c0_3, %c0_4] : memref<1x8x32xf32, #tpu.memory_space<vmem>>, vector<1x8x32xf32>
    %5 = vector.shape_cast %4 : vector<1x8x32xf32> to vector<8x32xf32>
    %6 = vector.shape_cast %3 : vector<32x32xf32> to vector<4x8x32xf32>
    %7 = vector.shape_cast %5 : vector<8x32xf32> to vector<1x8x32xf32>
    %8 = vector.broadcast %7 : vector<1x8x32xf32> to vector<4x8x32xf32>
    %9 = arith.addf %6, %8 : vector<4x8x32xf32>
    %10 = vector.shape_cast %9 : vector<4x8x32xf32> to vector<32x32xf32>
    %c0_5 = arith.constant 0 : index
    %c0_6 = arith.constant 0 : index
    %c0_7 = arith.constant 0 : index
    %11 = vector.load %arg4[%c0_5, %c0_6, %c0_7] : memref<1x32x96xf32, #tpu.memory_space<vmem>>, vector<1x32x96xf32>
    %12 = vector.shape_cast %11 : vector<1x32x96xf32> to vector<32x96xf32>
    %cst = arith.constant dense<0.000000e+00> : vector<32x96xf32>
    %13 = tpu.matmul %10, %12, %cst {dimension_numbers = #tpu.dot_dimension_numbers<[1], [0], [0], [1], [0, 0, 1, 1], [], []>} : vector<32x32xf32>, vector<32x96xf32>, vector<32x96xf32> -> vector<32x96xf32>
    %14 = vector.extract_strided_slice %13 {offsets = [0, 0], sizes = [32, 32], strides = [1, 1]} : vector<32x96xf32> to vector<32x32xf32>
    %15 = vector.shape_cast %14 : vector<32x32xf32> to vector<4x8x32xf32>
    %16 = vector.extract_strided_slice %13 {offsets = [0, 32], sizes = [32, 32], strides = [1, 1]} : vector<32x96xf32> to vector<32x32xf32>
    %17 = vector.shape_cast %16 : vector<32x32xf32> to vector<4x8x32xf32>
    %18 = vector.extract_strided_slice %13 {offsets = [0, 64], sizes = [32, 32], strides = [1, 1]} : vector<32x96xf32> to vector<32x32xf32>
    %19 = vector.shape_cast %18 : vector<32x32xf32> to vector<4x8x32xf32>
    %cst_8 = arith.constant 8.000000e+00 : f32
    %20 = math.sqrt %cst_8 : f32
    %cst_9 = arith.constant 1.000000e+00 : f32
    %21 = arith.divf %cst_9, %20 : f32
    %22 = vector.extract_strided_slice %15 {offsets = [0, 0, 0], sizes = [4, 8, 8], strides = [1, 1, 1]} : vector<4x8x32xf32> to vector<4x8x8xf32>
    %23 = vector.extract_strided_slice %17 {offsets = [0, 0, 0], sizes = [4, 8, 8], strides = [1, 1, 1]} : vector<4x8x32xf32> to vector<4x8x8xf32>
    %24 = vector.extract_strided_slice %19 {offsets = [0, 0, 0], sizes = [4, 8, 8], strides = [1, 1, 1]} : vector<4x8x32xf32> to vector<4x8x8xf32>
    "tpu.trace_start"() <{level = 10 : i32, message = "bqd,bkd->bqk"}> : () -> ()
    %cst_10 = arith.constant dense<0.000000e+00> : vector<4x8x8xf32>
    %25 = tpu.matmul %22, %23, %cst_10 {dimension_numbers = #tpu.dot_dimension_numbers<[2], [2], [1], [1], [0, 0, 0, 1, 1, 1], [0], [0]>} : vector<4x8x8xf32>, vector<4x8x8xf32>, vector<4x8x8xf32> -> vector<4x8x8xf32>
    "tpu.trace_stop"() : () -> ()
    %26 = vector.broadcast %21 : f32 to vector<4x8x8xf32>
    %27 = arith.mulf %25, %26 : vector<4x8x8xf32>
    %cst_11 = arith.constant dense<0xFF800000> : vector<4x8xf32>
    %28 = vector.multi_reduction <maximumf>, %27, %cst_11 [2] : vector<4x8x8xf32> to vector<4x8xf32>
    %29 = vector.shape_cast %28 : vector<4x8xf32> to vector<4x8x1xf32>
    %30 = vector.broadcast %29 : vector<4x8x1xf32> to vector<4x8x8xf32>
    %31 = arith.subf %27, %30 : vector<4x8x8xf32>
    %32 = math.exp %31 : vector<4x8x8xf32>
    %cst_12 = arith.constant dense<0.000000e+00> : vector<4x8xf32>
    %33 = vector.multi_reduction <add>, %32, %cst_12 [2] : vector<4x8x8xf32> to vector<4x8xf32>
    %34 = vector.shape_cast %33 : vector<4x8xf32> to vector<4x8x1xf32>
    %35 = tpu.reciprocal %34 {approx = true} : vector<4x8x1xf32> -> vector<4x8x1xf32>
    %36 = vector.broadcast %35 : vector<4x8x1xf32> to vector<4x8x8xf32>
    %37 = arith.mulf %32, %36 : vector<4x8x8xf32>
    "tpu.trace_start"() <{level = 10 : i32, message = "bqk,bkd->bqd"}> : () -> ()
    %cst_13 = arith.constant dense<0.000000e+00> : vector<4x8x8xf32>
    %38 = tpu.matmul %37, %24, %cst_13 {dimension_numbers = #tpu.dot_dimension_numbers<[2], [1], [1], [2], [0, 0, 0, 1, 1, 2], [0], [0]>} : vector<4x8x8xf32>, vector<4x8x8xf32>, vector<4x8x8xf32> -> vector<4x8x8xf32>
    "tpu.trace_stop"() : () -> ()
    %39 = vector.extract_strided_slice %15 {offsets = [0, 0, 8], sizes = [4, 8, 8], strides = [1, 1, 1]} : vector<4x8x32xf32> to vector<4x8x8xf32>
    %40 = vector.extract_strided_slice %17 {offsets = [0, 0, 8], sizes = [4, 8, 8], strides = [1, 1, 1]} : vector<4x8x32xf32> to vector<4x8x8xf32>
    %41 = vector.extract_strided_slice %19 {offsets = [0, 0, 8], sizes = [4, 8, 8], strides = [1, 1, 1]} : vector<4x8x32xf32> to vector<4x8x8xf32>
    "tpu.trace_start"() <{level = 10 : i32, message = "bqd,bkd->bqk"}> : () -> ()
    %cst_14 = arith.constant dense<0.000000e+00> : vector<4x8x8xf32>
    %42 = tpu.matmul %39, %40, %cst_14 {dimension_numbers = #tpu.dot_dimension_numbers<[2], [2], [1], [1], [0, 0, 0, 1, 1, 1], [0], [0]>} : vector<4x8x8xf32>, vector<4x8x8xf32>, vector<4x8x8xf32> -> vector<4x8x8xf32>
    "tpu.trace_stop"() : () -> ()
    %43 = vector.broadcast %21 : f32 to vector<4x8x8xf32>
    %44 = arith.mulf %42, %43 : vector<4x8x8xf32>
    %cst_15 = arith.constant dense<0xFF800000> : vector<4x8xf32>
    %45 = vector.multi_reduction <maximumf>, %44, %cst_15 [2] : vector<4x8x8xf32> to vector<4x8xf32>
    %46 = vector.shape_cast %45 : vector<4x8xf32> to vector<4x8x1xf32>
    %47 = vector.broadcast %46 : vector<4x8x1xf32> to vector<4x8x8xf32>
    %48 = arith.subf %44, %47 : vector<4x8x8xf32>
    %49 = math.exp %48 : vector<4x8x8xf32>
    %cst_16 = arith.constant dense<0.000000e+00> : vector<4x8xf32>
    %50 = vector.multi_reduction <add>, %49, %cst_16 [2] : vector<4x8x8xf32> to vector<4x8xf32>
    %51 = vector.shape_cast %50 : vector<4x8xf32> to vector<4x8x1xf32>
    %52 = tpu.reciprocal %51 {approx = true} : vector<4x8x1xf32> -> vector<4x8x1xf32>
    %53 = vector.broadcast %52 : vector<4x8x1xf32> to vector<4x8x8xf32>
    %54 = arith.mulf %49, %53 : vector<4x8x8xf32>
    "tpu.trace_start"() <{level = 10 : i32, message = "bqk,bkd->bqd"}> : () -> ()
    %cst_17 = arith.constant dense<0.000000e+00> : vector<4x8x8xf32>
    %55 = tpu.matmul %54, %41, %cst_17 {dimension_numbers = #tpu.dot_dimension_numbers<[2], [1], [1], [2], [0, 0, 0, 1, 1, 2], [0], [0]>} : vector<4x8x8xf32>, vector<4x8x8xf32>, vector<4x8x8xf32> -> vector<4x8x8xf32>
    "tpu.trace_stop"() : () -> ()
    %56 = vector.extract_strided_slice %15 {offsets = [0, 0, 16], sizes = [4, 8, 8], strides = [1, 1, 1]} : vector<4x8x32xf32> to vector<4x8x8xf32>
    %57 = vector.extract_strided_slice %17 {offsets = [0, 0, 16], sizes = [4, 8, 8], strides = [1, 1, 1]} : vector<4x8x32xf32> to vector<4x8x8xf32>
    %58 = vector.extract_strided_slice %19 {offsets = [0, 0, 16], sizes = [4, 8, 8], strides = [1, 1, 1]} : vector<4x8x32xf32> to vector<4x8x8xf32>
    "tpu.trace_start"() <{level = 10 : i32, message = "bqd,bkd->bqk"}> : () -> ()
    %cst_18 = arith.constant dense<0.000000e+00> : vector<4x8x8xf32>
    %59 = tpu.matmul %56, %57, %cst_18 {dimension_numbers = #tpu.dot_dimension_numbers<[2], [2], [1], [1], [0, 0, 0, 1, 1, 1], [0], [0]>} : vector<4x8x8xf32>, vector<4x8x8xf32>, vector<4x8x8xf32> -> vector<4x8x8xf32>
    "tpu.trace_stop"() : () -> ()
    %60 = vector.broadcast %21 : f32 to vector<4x8x8xf32>
    %61 = arith.mulf %59, %60 : vector<4x8x8xf32>
    %cst_19 = arith.constant dense<0xFF800000> : vector<4x8xf32>
    %62 = vector.multi_reduction <maximumf>, %61, %cst_19 [2] : vector<4x8x8xf32> to vector<4x8xf32>
    %63 = vector.shape_cast %62 : vector<4x8xf32> to vector<4x8x1xf32>
    %64 = vector.broadcast %63 : vector<4x8x1xf32> to vector<4x8x8xf32>
    %65 = arith.subf %61, %64 : vector<4x8x8xf32>
    %66 = math.exp %65 : vector<4x8x8xf32>
    %cst_20 = arith.constant dense<0.000000e+00> : vector<4x8xf32>
    %67 = vector.multi_reduction <add>, %66, %cst_20 [2] : vector<4x8x8xf32> to vector<4x8xf32>
    %68 = vector.shape_cast %67 : vector<4x8xf32> to vector<4x8x1xf32>
    %69 = tpu.reciprocal %68 {approx = true} : vector<4x8x1xf32> -> vector<4x8x1xf32>
    %70 = vector.broadcast %69 : vector<4x8x1xf32> to vector<4x8x8xf32>
    %71 = arith.mulf %66, %70 : vector<4x8x8xf32>
    "tpu.trace_start"() <{level = 10 : i32, message = "bqk,bkd->bqd"}> : () -> ()
    %cst_21 = arith.constant dense<0.000000e+00> : vector<4x8x8xf32>
    %72 = tpu.matmul %71, %58, %cst_21 {dimension_numbers = #tpu.dot_dimension_numbers<[2], [1], [1], [2], [0, 0, 0, 1, 1, 2], [0], [0]>} : vector<4x8x8xf32>, vector<4x8x8xf32>, vector<4x8x8xf32> -> vector<4x8x8xf32>
    "tpu.trace_stop"() : () -> ()
    %73 = vector.extract_strided_slice %15 {offsets = [0, 0, 24], sizes = [4, 8, 8], strides = [1, 1, 1]} : vector<4x8x32xf32> to vector<4x8x8xf32>
    %74 = vector.extract_strided_slice %17 {offsets = [0, 0, 24], sizes = [4, 8, 8], strides = [1, 1, 1]} : vector<4x8x32xf32> to vector<4x8x8xf32>
    %75 = vector.extract_strided_slice %19 {offsets = [0, 0, 24], sizes = [4, 8, 8], strides = [1, 1, 1]} : vector<4x8x32xf32> to vector<4x8x8xf32>
    "tpu.trace_start"() <{level = 10 : i32, message = "bqd,bkd->bqk"}> : () -> ()
    %cst_22 = arith.constant dense<0.000000e+00> : vector<4x8x8xf32>
    %76 = tpu.matmul %73, %74, %cst_22 {dimension_numbers = #tpu.dot_dimension_numbers<[2], [2], [1], [1], [0, 0, 0, 1, 1, 1], [0], [0]>} : vector<4x8x8xf32>, vector<4x8x8xf32>, vector<4x8x8xf32> -> vector<4x8x8xf32>
    "tpu.trace_stop"() : () -> ()
    %77 = vector.broadcast %21 : f32 to vector<4x8x8xf32>
    %78 = arith.mulf %76, %77 : vector<4x8x8xf32>
    %cst_23 = arith.constant dense<0xFF800000> : vector<4x8xf32>
    %79 = vector.multi_reduction <maximumf>, %78, %cst_23 [2] : vector<4x8x8xf32> to vector<4x8xf32>
    %80 = vector.shape_cast %79 : vector<4x8xf32> to vector<4x8x1xf32>
    %81 = vector.broadcast %80 : vector<4x8x1xf32> to vector<4x8x8xf32>
    %82 = arith.subf %78, %81 : vector<4x8x8xf32>
    %83 = math.exp %82 : vector<4x8x8xf32>
    %cst_24 = arith.constant dense<0.000000e+00> : vector<4x8xf32>
    %84 = vector.multi_reduction <add>, %83, %cst_24 [2] : vector<4x8x8xf32> to vector<4x8xf32>
    %85 = vector.shape_cast %84 : vector<4x8xf32> to vector<4x8x1xf32>
    %86 = tpu.reciprocal %85 {approx = true} : vector<4x8x1xf32> -> vector<4x8x1xf32>
    %87 = vector.broadcast %86 : vector<4x8x1xf32> to vector<4x8x8xf32>
    %88 = arith.mulf %83, %87 : vector<4x8x8xf32>
    "tpu.trace_start"() <{level = 10 : i32, message = "bqk,bkd->bqd"}> : () -> ()
    %cst_25 = arith.constant dense<0.000000e+00> : vector<4x8x8xf32>
    %89 = tpu.matmul %88, %75, %cst_25 {dimension_numbers = #tpu.dot_dimension_numbers<[2], [1], [1], [2], [0, 0, 0, 1, 1, 2], [0], [0]>} : vector<4x8x8xf32>, vector<4x8x8xf32>, vector<4x8x8xf32> -> vector<4x8x8xf32>
    "tpu.trace_stop"() : () -> ()
    %90 = tpu.concatenate %38, %55, %72, %89 in 2 : vector<4x8x8xf32>, vector<4x8x8xf32>, vector<4x8x8xf32>, vector<4x8x8xf32> -> vector<4x8x32xf32>
    %91 = vector.shape_cast %90 : vector<4x8x32xf32> to vector<32x32xf32>
    %c0_26 = arith.constant 0 : index
    %c0_27 = arith.constant 0 : index
    %c0_28 = arith.constant 0 : index
    %92 = vector.load %arg9[%c0_26, %c0_27, %c0_28] : memref<1x2x32xf32, #tpu.memory_space<vmem>>, vector<1x1x32xf32>
    %93 = vector.shape_cast %92 : vector<1x1x32xf32> to vector<1x32xf32>
    %c0_29 = arith.constant 0 : index
    %c1 = arith.constant 1 : index
    %c0_30 = arith.constant 0 : index
    %94 = vector.load %arg9[%c0_29, %c1, %c0_30] : memref<1x2x32xf32, #tpu.memory_space<vmem>>, vector<1x1x32xf32>
    %95 = vector.shape_cast %94 : vector<1x1x32xf32> to vector<1x32xf32>
    %c0_31 = arith.constant 0 : index
    %c0_32 = arith.constant 0 : index
    %c0_33 = arith.constant 0 : index
    %96 = vector.load %arg5[%c0_31, %c0_32, %c0_33] : memref<1x32x32xf32, #tpu.memory_space<vmem>>, vector<1x32x32xf32>
    %97 = vector.shape_cast %96 : vector<1x32x32xf32> to vector<32x32xf32>
    %cst_34 = arith.constant dense<0.000000e+00> : vector<32x32xf32>
    %98 = tpu.matmul %91, %97, %cst_34 {dimension_numbers = #tpu.dot_dimension_numbers<[1], [0], [0], [1], [0, 0, 1, 1], [], []>} : vector<32x32xf32>, vector<32x32xf32>, vector<32x32xf32> -> vector<32x32xf32>
    %99 = vector.broadcast %93 : vector<1x32xf32> to vector<32x32xf32>
    %100 = arith.addf %98, %99 : vector<32x32xf32>
    %c0_35 = arith.constant 0 : index
    %c0_36 = arith.constant 0 : index
    %c0_37 = arith.constant 0 : index
    %101 = vector.load %arg8[%c0_35, %c0_36, %c0_37] : memref<1x6x32xf32, #tpu.memory_space<vmem>>, vector<1x6x32xf32>
    %102 = vector.shape_cast %101 : vector<1x6x32xf32> to vector<6x32xf32>
    %103 = arith.addf %100, %10 : vector<32x32xf32>
    %104 = vector.extract_strided_slice %102 {offsets = [0, 0], sizes = [1, 32], strides = [1, 1]} : vector<6x32xf32> to vector<1x32xf32>
    %105 = vector.extract_strided_slice %102 {offsets = [1, 0], sizes = [1, 32], strides = [1, 1]} : vector<6x32xf32> to vector<1x32xf32>
    %cst_38 = arith.constant dense<0.000000e+00> : vector<32xf32>
    %106 = vector.multi_reduction <add>, %103, %cst_38 [1] : vector<32x32xf32> to vector<32xf32>
    %107 = vector.shape_cast %106 : vector<32xf32> to vector<32x1xf32>
    %cst_39 = arith.constant 3.200000e+01 : f32
    %108 = vector.broadcast %cst_39 : f32 to vector<32x1xf32>
    %109 = arith.divf %107, %108 : vector<32x1xf32>
    %110 = vector.broadcast %109 : vector<32x1xf32> to vector<32x32xf32>
    %111 = arith.subf %103, %110 : vector<32x32xf32>
    %112 = vector.broadcast %109 : vector<32x1xf32> to vector<32x32xf32>
    %113 = arith.subf %103, %112 : vector<32x32xf32>
    %114 = arith.mulf %111, %113 : vector<32x32xf32>
    %cst_40 = arith.constant dense<0.000000e+00> : vector<32xf32>
    %115 = vector.multi_reduction <add>, %114, %cst_40 [1] : vector<32x32xf32> to vector<32xf32>
    %116 = vector.shape_cast %115 : vector<32xf32> to vector<32x1xf32>
    %cst_41 = arith.constant 3.200000e+01 : f32
    %117 = vector.broadcast %cst_41 : f32 to vector<32x1xf32>
    %118 = arith.divf %116, %117 : vector<32x1xf32>
    %119 = vector.broadcast %109 : vector<32x1xf32> to vector<32x32xf32>
    %120 = arith.subf %103, %119 : vector<32x32xf32>
    %cst_42 = arith.constant 9.99999974E-6 : f32
    %121 = vector.broadcast %cst_42 : f32 to vector<32x1xf32>
    %122 = arith.addf %118, %121 : vector<32x1xf32>
    %123 = math.rsqrt %122 : vector<32x1xf32>
    %124 = vector.broadcast %123 : vector<32x1xf32> to vector<32x32xf32>
    %125 = arith.mulf %120, %124 : vector<32x32xf32>
    %126 = vector.broadcast %104 : vector<1x32xf32> to vector<32x32xf32>
    %127 = arith.mulf %125, %126 : vector<32x32xf32>
    %128 = vector.broadcast %105 : vector<1x32xf32> to vector<32x32xf32>
    %129 = arith.addf %127, %128 : vector<32x32xf32>
    %c0_43 = arith.constant 0 : index
    %c0_44 = arith.constant 0 : index
    %c0_45 = arith.constant 0 : index
    %130 = vector.load %arg6[%c0_43, %c0_44, %c0_45] : memref<1x32x64xf32, #tpu.memory_space<vmem>>, vector<1x32x64xf32>
    %131 = vector.shape_cast %130 : vector<1x32x64xf32> to vector<32x64xf32>
    %cst_46 = arith.constant dense<0.000000e+00> : vector<32x64xf32>
    %132 = tpu.matmul %129, %131, %cst_46 {dimension_numbers = #tpu.dot_dimension_numbers<[1], [0], [0], [1], [0, 0, 1, 1], [], []>} : vector<32x32xf32>, vector<32x64xf32>, vector<32x64xf32> -> vector<32x64xf32>
    %c0_47 = arith.constant 0 : index
    %c0_48 = arith.constant 0 : index
    %c0_49 = arith.constant 0 : index
    %133 = vector.load %arg10[%c0_47, %c0_48, %c0_49] : memref<1x1x64xf32, #tpu.memory_space<vmem>>, vector<1x1x64xf32>
    %134 = vector.shape_cast %133 : vector<1x1x64xf32> to vector<1x64xf32>
    %135 = vector.broadcast %134 : vector<1x64xf32> to vector<32x64xf32>
    %136 = arith.addf %132, %135 : vector<32x64xf32>
    %cst_50 = arith.constant 0.000000e+00 : f32
    %137 = vector.broadcast %cst_50 : f32 to vector<32x64xf32>
    %138 = arith.maximumf %136, %137 : vector<32x64xf32>
    %c0_51 = arith.constant 0 : index
    %c0_52 = arith.constant 0 : index
    %c0_53 = arith.constant 0 : index
    %139 = vector.load %arg7[%c0_51, %c0_52, %c0_53] : memref<1x64x32xf32, #tpu.memory_space<vmem>>, vector<1x64x32xf32>
    %140 = vector.shape_cast %139 : vector<1x64x32xf32> to vector<64x32xf32>
    %cst_54 = arith.constant dense<0.000000e+00> : vector<32x32xf32>
    %141 = tpu.matmul %138, %140, %cst_54 {dimension_numbers = #tpu.dot_dimension_numbers<[1], [0], [0], [1], [0, 0, 1, 1], [], []>} : vector<32x64xf32>, vector<64x32xf32>, vector<32x32xf32> -> vector<32x32xf32>
    %142 = vector.broadcast %95 : vector<1x32xf32> to vector<32x32xf32>
    %143 = arith.addf %141, %142 : vector<32x32xf32>
    %144 = arith.addf %143, %129 : vector<32x32xf32>
    %145 = vector.extract_strided_slice %102 {offsets = [2, 0], sizes = [1, 32], strides = [1, 1]} : vector<6x32xf32> to vector<1x32xf32>
    %146 = vector.extract_strided_slice %102 {offsets = [3, 0], sizes = [1, 32], strides = [1, 1]} : vector<6x32xf32> to vector<1x32xf32>
    %cst_55 = arith.constant dense<0.000000e+00> : vector<32xf32>
    %147 = vector.multi_reduction <add>, %144, %cst_55 [1] : vector<32x32xf32> to vector<32xf32>
    %148 = vector.shape_cast %147 : vector<32xf32> to vector<32x1xf32>
    %cst_56 = arith.constant 3.200000e+01 : f32
    %149 = vector.broadcast %cst_56 : f32 to vector<32x1xf32>
    %150 = arith.divf %148, %149 : vector<32x1xf32>
    %151 = vector.broadcast %150 : vector<32x1xf32> to vector<32x32xf32>
    %152 = arith.subf %144, %151 : vector<32x32xf32>
    %153 = vector.broadcast %150 : vector<32x1xf32> to vector<32x32xf32>
    %154 = arith.subf %144, %153 : vector<32x32xf32>
    %155 = arith.mulf %152, %154 : vector<32x32xf32>
    %cst_57 = arith.constant dense<0.000000e+00> : vector<32xf32>
    %156 = vector.multi_reduction <add>, %155, %cst_57 [1] : vector<32x32xf32> to vector<32xf32>
    %157 = vector.shape_cast %156 : vector<32xf32> to vector<32x1xf32>
    %cst_58 = arith.constant 3.200000e+01 : f32
    %158 = vector.broadcast %cst_58 : f32 to vector<32x1xf32>
    %159 = arith.divf %157, %158 : vector<32x1xf32>
    %160 = vector.broadcast %150 : vector<32x1xf32> to vector<32x32xf32>
    %161 = arith.subf %144, %160 : vector<32x32xf32>
    %cst_59 = arith.constant 9.99999974E-6 : f32
    %162 = vector.broadcast %cst_59 : f32 to vector<32x1xf32>
    %163 = arith.addf %159, %162 : vector<32x1xf32>
    %164 = math.rsqrt %163 : vector<32x1xf32>
    %165 = vector.broadcast %164 : vector<32x1xf32> to vector<32x32xf32>
    %166 = arith.mulf %161, %165 : vector<32x32xf32>
    %167 = vector.broadcast %145 : vector<1x32xf32> to vector<32x32xf32>
    %168 = arith.mulf %166, %167 : vector<32x32xf32>
    %169 = vector.broadcast %146 : vector<1x32xf32> to vector<32x32xf32>
    %170 = arith.addf %168, %169 : vector<32x32xf32>
    %171 = arith.addf %170, %3 : vector<32x32xf32>
    %172 = vector.extract_strided_slice %102 {offsets = [4, 0], sizes = [1, 32], strides = [1, 1]} : vector<6x32xf32> to vector<1x32xf32>
    %173 = vector.extract_strided_slice %102 {offsets = [5, 0], sizes = [1, 32], strides = [1, 1]} : vector<6x32xf32> to vector<1x32xf32>
    %cst_60 = arith.constant dense<0.000000e+00> : vector<32xf32>
    %174 = vector.multi_reduction <add>, %171, %cst_60 [1] : vector<32x32xf32> to vector<32xf32>
    %175 = vector.shape_cast %174 : vector<32xf32> to vector<32x1xf32>
    %cst_61 = arith.constant 3.200000e+01 : f32
    %176 = vector.broadcast %cst_61 : f32 to vector<32x1xf32>
    %177 = arith.divf %175, %176 : vector<32x1xf32>
    %178 = vector.broadcast %177 : vector<32x1xf32> to vector<32x32xf32>
    %179 = arith.subf %171, %178 : vector<32x32xf32>
    %180 = vector.broadcast %177 : vector<32x1xf32> to vector<32x32xf32>
    %181 = arith.subf %171, %180 : vector<32x32xf32>
    %182 = arith.mulf %179, %181 : vector<32x32xf32>
    %cst_62 = arith.constant dense<0.000000e+00> : vector<32xf32>
    %183 = vector.multi_reduction <add>, %182, %cst_62 [1] : vector<32x32xf32> to vector<32xf32>
    %184 = vector.shape_cast %183 : vector<32xf32> to vector<32x1xf32>
    %cst_63 = arith.constant 3.200000e+01 : f32
    %185 = vector.broadcast %cst_63 : f32 to vector<32x1xf32>
    %186 = arith.divf %184, %185 : vector<32x1xf32>
    %187 = vector.broadcast %177 : vector<32x1xf32> to vector<32x32xf32>
    %188 = arith.subf %171, %187 : vector<32x32xf32>
    %cst_64 = arith.constant 9.99999974E-6 : f32
    %189 = vector.broadcast %cst_64 : f32 to vector<32x1xf32>
    %190 = arith.addf %186, %189 : vector<32x1xf32>
    %191 = math.rsqrt %190 : vector<32x1xf32>
    %192 = vector.broadcast %191 : vector<32x1xf32> to vector<32x32xf32>
    %193 = arith.mulf %188, %192 : vector<32x32xf32>
    %194 = vector.broadcast %172 : vector<1x32xf32> to vector<32x32xf32>
    %195 = arith.mulf %193, %194 : vector<32x32xf32>
    %196 = vector.broadcast %173 : vector<1x32xf32> to vector<32x32xf32>
    %197 = arith.addf %195, %196 : vector<32x32xf32>
    %c0_65 = arith.constant 0 : index
    %c0_66 = arith.constant 0 : index
    %198 = vector.load %arg11[%c0_65, %c0_66] : memref<32x32xf32, #tpu.memory_space<vmem>>, vector<32x32xf32>
    tpu.vector_store %arg11[%c0_65, %c0_66], %197 {strides = array<i32>} : memref<32x32xf32, #tpu.memory_space<vmem>>, vector<32x32xf32>,
    return
  }
  func.func @transform_0(%arg0: i32, %arg1: i32) -> (i32, i32) {
    %c0_i32 = arith.constant 0 : i32
    %c0_i32_0 = arith.constant 0 : i32
    return %arg0, %c0_i32 : i32, i32
  }
  func.func @transform_1(%arg0: i32, %arg1: i32) -> (i32, i32, i32) {
    %c0_i32 = arith.constant 0 : i32
    %c0_i32_0 = arith.constant 0 : i32
    %c0_i32_1 = arith.constant 0 : i32
    return %arg1, %c0_i32, %c0_i32_0 : i32, i32, i32
  }
  func.func @transform_2(%arg0: i32, %arg1: i32) -> (i32, i32, i32) {
    %c0_i32 = arith.constant 0 : i32
    %c0_i32_0 = arith.constant 0 : i32
    %c0_i32_1 = arith.constant 0 : i32
    return %arg1, %c0_i32, %c0_i32_0 : i32, i32, i32
  }
  func.func @transform_3(%arg0: i32, %arg1: i32) -> (i32, i32, i32) {
    %c0_i32 = arith.constant 0 : i32
    %c0_i32_0 = arith.constant 0 : i32
    %c0_i32_1 = arith.constant 0 : i32
    return %arg1, %c0_i32, %c0_i32_0 : i32, i32, i32
  }
  func.func @transform_4(%arg0: i32, %arg1: i32) -> (i32, i32, i32) {
    %c0_i32 = arith.constant 0 : i32
    %c0_i32_0 = arith.constant 0 : i32
    %c0_i32_1 = arith.constant 0 : i32
    return %arg1, %c0_i32, %c0_i32_0 : i32, i32, i32
  }
  func.func @transform_5(%arg0: i32, %arg1: i32) -> (i32, i32, i32) {
    %c0_i32 = arith.constant 0 : i32
    %c0_i32_0 = arith.constant 0 : i32
    %c0_i32_1 = arith.constant 0 : i32
    return %arg1, %c0_i32, %c0_i32_0 : i32, i32, i32
  }
  func.func @transform_6(%arg0: i32, %arg1: i32) -> (i32, i32, i32) {
    %c0_i32 = arith.constant 0 : i32
    %c0_i32_0 = arith.constant 0 : i32
    %c0_i32_1 = arith.constant 0 : i32
    return %arg1, %c0_i32, %c0_i32_0 : i32, i32, i32
  }
  func.func @transform_7(%arg0: i32, %arg1: i32) -> (i32, i32, i32) {
    %c0_i32 = arith.constant 0 : i32
    %c0_i32_0 = arith.constant 0 : i32
    %c0_i32_1 = arith.constant 0 : i32
    return %arg1, %c0_i32, %c0_i32_0 : i32, i32, i32
  }
  func.func @transform_8(%arg0: i32, %arg1: i32) -> (i32, i32, i32) {
    %c0_i32 = arith.constant 0 : i32
    %c0_i32_0 = arith.constant 0 : i32
    %c0_i32_1 = arith.constant 0 : i32
    return %arg1, %c0_i32, %c0_i32_0 : i32, i32, i32
  }
  func.func @transform_9(%arg0: i32, %arg1: i32) -> (i32, i32) {
    %c0_i32 = arith.constant 0 : i32
    %c0_i32_0 = arith.constant 0 : i32
    return %arg0, %c0_i32 : i32, i32
  }
}

</mosaic_0001>

<llo_original>
// kernel: tpu_custom_call.1
$region0: #{tpu_custom_call.1}
  #allocation0 [shape = 'u32[]', space=smem, size = 0x4, offset = 0x4, fixed_abs, tag = 'smem constant byte address 0x4 - core index']
  #allocation1 [shape = 'u32[72,128]{1,0:T(1,128)}', space=vmem, size = 0x9000, scoped, tag = 'internal scratch']
  %s0 = inlined_call_operand.vmem [shape: f32[64,32], index: 0, kind: input, shape index: {}]
  %s1 = inlined_call_operand.vmem [shape: f32[2,8,32], index: 1, kind: input, shape index: {}]
  %s2 = inlined_call_operand.vmem [shape: f32[2,32,96], index: 2, kind: input, shape index: {}]
  %s3 = inlined_call_operand.vmem [shape: f32[2,32,32], index: 3, kind: input, shape index: {}]
  %s4 = inlined_call_operand.vmem [shape: f32[2,32,64], index: 4, kind: input, shape index: {}]
  %s5 = inlined_call_operand.vmem [shape: f32[2,64,32], index: 5, kind: input, shape index: {}]
  %s6 = inlined_call_operand.vmem [shape: f32[2,6,32], index: 6, kind: input, shape index: {}]
  %s7 = inlined_call_operand.vmem [shape: f32[2,2,32], index: 7, kind: input, shape index: {}]
  %s8 = inlined_call_operand.vmem [shape: f32[2,1,64], index: 8, kind: input, shape index: {}]
  %s9 = inlined_call_operand.vmem [shape: f32[64,32], index: 9, kind: output, shape index: {}]
  %s10 = sld [smem:[#allocation0]]
  $region73: #{tpu_custom_call.1} parent=0
    _
  %s12 = ssub.s32 1, %s10
  %s13 = scalar_select 0, %s12, %s10
  loop: start=0, step=1, limit=6
  $region2: #{tpu_custom_call.1} parent=0 // loop_pre_header
    _
  $region3: #{tpu_custom_call.1} parent=0 // loop_header
    %s15 = sphi 0, %s19
    %p16 = scmp.ge.s32.totalorder %s15, 6
    %s22 = sphi 0, %s34
    %s23 = sphi 0, %s30
    %s24 = sphi 0, %s22
    %s25 = sphi 0, %s23
    %s26 = sphi 0, %s24
    %s27 = sphi 0, %s25
    %s37 = sphi 0, %s39
    %s40 = sphi 0, %s37
    %s41 = sphi 0, %s40
    %s57 = sphi 0, %s41
    %s63 = sphi 0, %s65
    %s66 = sphi 0, %s63
    %s67 = sphi 0, %s66
    %s83 = sphi 0, %s67
    %s89 = sphi 0, %s91
    %s92 = sphi 0, %s89
    %s93 = sphi 0, %s92
    %s109 = sphi 0, %s93
    %s115 = sphi 0, %s117
    %s118 = sphi 0, %s115
    %s119 = sphi 0, %s118
    %s135 = sphi 0, %s119
    %s141 = sphi 0, %s143
    %s144 = sphi 0, %s141
    %s145 = sphi 0, %s144
    %s161 = sphi 0, %s145
    %s167 = sphi 0, %s169
    %s170 = sphi 0, %s167
    %s171 = sphi 0, %s170
    %s187 = sphi 0, %s171
    %s193 = sphi 0, %s195
    %s196 = sphi 0, %s193
    %s197 = sphi 0, %s196
    %s213 = sphi 0, %s197
    %s219 = sphi 0, %s221
    %s222 = sphi 0, %s219
    %s223 = sphi 0, %s222
    %s239 = sphi 0, %s223
    %s245 = sphi 0, %s247
    %s248 = sphi 0, %s245
    %s249 = sphi 0, %s248
    %s265 = sphi 0, %s249
    %s271 = sphi 0, %s273
    %s274 = sphi 0, %s271
    %s275 = sphi 0, %s274
    %s291 = sphi 0, %s275
  $region4: #{tpu_custom_call.1} parent=0 // loop_header_branch
    %18 = sbr.rel (%p16) target = $region8
  $region5: #{tpu_custom_call.1} parent=0 // loop_body
    %s20 = ssub.s32 %s15, 1
    %s21 = ssub.s32 %s15, 2
    %s28 = sadd.s32 1, %s23
    %p29 = scmp.ge.s32.totalorder %s28, 2
    %s30 = scalar_select %p29, 0, %s28
    %s31 = sadd.s32 1, %s22
    %s32 = scalar_select %p29, %s31, %s22
    %p33 = scmp.ge.s32.totalorder %s32, 2
    %s34 = scalar_select %p33, 0, %s32
    %s35 = ssub.s32 %s22, %s34
    %p36 = scmp.eq.s32.totalorder %s35, 0
    %s38 = sadd.s32 %s37, 1
    %s39 = scalar_select %p36, %s37, %s38
    %p42 = pneg %p36
    %p43 = scmp.eq.s32.totalorder %s15, 3
    %p44 = por %p42, %p43
    %p45 = scmp.ne.s32.totalorder %s37, %s40
    %p46 = scmp.eq.s32.totalorder %s15, 0
    %p47 = por %p45, %p46
    %p48 = scmp.ne.s32.totalorder %s37, %s40
    %p49 = scmp.eq.s32.totalorder %s20, 3
    %p50 = por %p48, %p49
    %p51 = scmp.ne.s32.totalorder %s40, %s41
    %p52 = scmp.eq.s32.totalorder %s20, 0
    %p53 = por %p51, %p52
    %p54 = scmp.ne.s32.totalorder %s40, %s41
    %p55 = scmp.eq.s32.totalorder %s21, 3
    %p56 = por %p54, %p55
    %p58 = scmp.ne.s32.totalorder %s41, %s57
    %p59 = scmp.eq.s32.totalorder %s21, 0
    %p60 = por %p58, %p59
    %s61 = ssub.s32 %s23, %s30
    %p62 = scmp.eq.s32.totalorder %s61, 0
    %s64 = sadd.s32 %s63, 1
    %s65 = scalar_select %p62, %s63, %s64
    %p68 = pneg %p62
    %p69 = scmp.eq.s32.totalorder %s15, 3
    %p70 = por %p68, %p69
    %p71 = scmp.ne.s32.totalorder %s63, %s66
    %p72 = scmp.eq.s32.totalorder %s15, 0
    %p73 = por %p71, %p72
    %p74 = scmp.ne.s32.totalorder %s63, %s66
    %p75 = scmp.eq.s32.totalorder %s20, 3
    %p76 = por %p74, %p75
    %p77 = scmp.ne.s32.totalorder %s66, %s67
    %p78 = scmp.eq.s32.totalorder %s20, 0
    %p79 = por %p77, %p78
    %p80 = scmp.ne.s32.totalorder %s66, %s67
    %p81 = scmp.eq.s32.totalorder %s21, 3
    %p82 = por %p80, %p81
    %p84 = scmp.ne.s32.totalorder %s67, %s83
    %p85 = scmp.eq.s32.totalorder %s21, 0
    %p86 = por %p84, %p85
    %s87 = ssub.s32 %s23, %s30
    %p88 = scmp.eq.s32.totalorder %s87, 0
    %s90 = sadd.s32 %s89, 1
    %s91 = scalar_select %p88, %s89, %s90
    %p94 = pneg %p88
    %p95 = scmp.eq.s32.totalorder %s15, 3
    %p96 = por %p94, %p95
    %p97 = scmp.ne.s32.totalorder %s89, %s92
    %p98 = scmp.eq.s32.totalorder %s15, 0
    %p99 = por %p97, %p98
    %p100 = scmp.ne.s32.totalorder %s89, %s92
    %p101 = scmp.eq.s32.totalorder %s20, 3
    %p102 = por %p100, %p101
    %p103 = scmp.ne.s32.totalorder %s92, %s93
    %p104 = scmp.eq.s32.totalorder %s20, 0
    %p105 = por %p103, %p104
    %p106 = scmp.ne.s32.totalorder %s92, %s93
    %p107 = scmp.eq.s32.totalorder %s21, 3
    %p108 = por %p106, %p107
    %p110 = scmp.ne.s32.totalorder %s93, %s109
    %p111 = scmp.eq.s32.totalorder %s21, 0
    %p112 = por %p110, %p111
    %s113 = ssub.s32 %s23, %s30
    %p114 = scmp.eq.s32.totalorder %s113, 0
    %s116 = sadd.s32 %s115, 1
    %s117 = scalar_select %p114, %s115, %s116
    %p120 = pneg %p114
    %p121 = scmp.eq.s32.totalorder %s15, 3
    %p122 = por %p120, %p121
    %p123 = scmp.ne.s32.totalorder %s115, %s118
    %p124 = scmp.eq.s32.totalorder %s15, 0
    %p125 = por %p123, %p124
    %p126 = scmp.ne.s32.totalorder %s115, %s118
    %p127 = scmp.eq.s32.totalorder %s20, 3
    %p128 = por %p126, %p127
    %p129 = scmp.ne.s32.totalorder %s118, %s119
    %p130 = scmp.eq.s32.totalorder %s20, 0
    %p131 = por %p129, %p130
    %p132 = scmp.ne.s32.totalorder %s118, %s119
    %p133 = scmp.eq.s32.totalorder %s21, 3
    %p134 = por %p132, %p133
    %p136 = scmp.ne.s32.totalorder %s119, %s135
    %p137 = scmp.eq.s32.totalorder %s21, 0
    %p138 = por %p136, %p137
    %s139 = ssub.s32 %s23, %s30
    %p140 = scmp.eq.s32.totalorder %s139, 0
    %s142 = sadd.s32 %s141, 1
    %s143 = scalar_select %p140, %s141, %s142
    %p146 = pneg %p140
    %p147 = scmp.eq.s32.totalorder %s15, 3
    %p148 = por %p146, %p147
    %p149 = scmp.ne.s32.totalorder %s141, %s144
    %p150 = scmp.eq.s32.totalorder %s15, 0
    %p151 = por %p149, %p150
    %p152 = scmp.ne.s32.totalorder %s141, %s144
    %p153 = scmp.eq.s32.totalorder %s20, 3
    %p154 = por %p152, %p153
    %p155 = scmp.ne.s32.totalorder %s144, %s145
    %p156 = scmp.eq.s32.totalorder %s20, 0
    %p157 = por %p155, %p156
    %p158 = scmp.ne.s32.totalorder %s144, %s145
    %p159 = scmp.eq.s32.totalorder %s21, 3
    %p160 = por %p158, %p159
    %p162 = scmp.ne.s32.totalorder %s145, %s161
    %p163 = scmp.eq.s32.totalorder %s21, 0
    %p164 = por %p162, %p163
    %s165 = ssub.s32 %s23, %s30
    %p166 = scmp.eq.s32.totalorder %s165, 0
    %s168 = sadd.s32 %s167, 1
    %s169 = scalar_select %p166, %s167, %s168
    %p172 = pneg %p166
    %p173 = scmp.eq.s32.totalorder %s15, 3
    %p174 = por %p172, %p173
    %p175 = scmp.ne.s32.totalorder %s167, %s170
    %p176 = scmp.eq.s32.totalorder %s15, 0
    %p177 = por %p175, %p176
    %p178 = scmp.ne.s32.totalorder %s167, %s170
    %p179 = scmp.eq.s32.totalorder %s20, 3
    %p180 = por %p178, %p179
    %p181 = scmp.ne.s32.totalorder %s170, %s171
    %p182 = scmp.eq.s32.totalorder %s20, 0
    %p183 = por %p181, %p182
    %p184 = scmp.ne.s32.totalorder %s170, %s171
    %p185 = scmp.eq.s32.totalorder %s21, 3
    %p186 = por %p184, %p185
    %p188 = scmp.ne.s32.totalorder %s171, %s187
    %p189 = scmp.eq.s32.totalorder %s21, 0
    %p190 = por %p188, %p189
    %s191 = ssub.s32 %s23, %s30
    %p192 = scmp.eq.s32.totalorder %s191, 0
    %s194 = sadd.s32 %s193, 1
    %s195 = scalar_select %p192, %s193, %s194
    %p198 = pneg %p192
    %p199 = scmp.eq.s32.totalorder %s15, 3
    %p200 = por %p198, %p199
    %p201 = scmp.ne.s32.totalorder %s193, %s196
    %p202 = scmp.eq.s32.totalorder %s15, 0
    %p203 = por %p201, %p202
    %p204 = scmp.ne.s32.totalorder %s193, %s196
    %p205 = scmp.eq.s32.totalorder %s20, 3
    %p206 = por %p204, %p205
    %p207 = scmp.ne.s32.totalorder %s196, %s197
    %p208 = scmp.eq.s32.totalorder %s20, 0
    %p209 = por %p207, %p208
    %p210 = scmp.ne.s32.totalorder %s196, %s197
    %p211 = scmp.eq.s32.totalorder %s21, 3
    %p212 = por %p210, %p211
    %p214 = scmp.ne.s32.totalorder %s197, %s213
    %p215 = scmp.eq.s32.totalorder %s21, 0
    %p216 = por %p214, %p215
    %s217 = ssub.s32 %s23, %s30
    %p218 = scmp.eq.s32.totalorder %s217, 0
    %s220 = sadd.s32 %s219, 1
    %s221 = scalar_select %p218, %s219, %s220
    %p224 = pneg %p218
    %p225 = scmp.eq.s32.totalorder %s15, 3
    %p226 = por %p224, %p225
    %p227 = scmp.ne.s32.totalorder %s219, %s222
    %p228 = scmp.eq.s32.totalorder %s15, 0
    %p229 = por %p227, %p228
    %p230 = scmp.ne.s32.totalorder %s219, %s222
    %p231 = scmp.eq.s32.totalorder %s20, 3
    %p232 = por %p230, %p231
    %p233 = scmp.ne.s32.totalorder %s222, %s223
    %p234 = scmp.eq.s32.totalorder %s20, 0
    %p235 = por %p233, %p234
    %p236 = scmp.ne.s32.totalorder %s222, %s223
    %p237 = scmp.eq.s32.totalorder %s21, 3
    %p238 = por %p236, %p237
    %p240 = scmp.ne.s32.totalorder %s223, %s239
    %p241 = scmp.eq.s32.totalorder %s21, 0
    %p242 = por %p240, %p241
    %s243 = ssub.s32 %s23, %s30
    %p244 = scmp.eq.s32.totalorder %s243, 0
    %s246 = sadd.s32 %s245, 1
    %s247 = scalar_select %p244, %s245, %s246
    %p250 = pneg %p244
    %p251 = scmp.eq.s32.totalorder %s15, 3
    %p252 = por %p250, %p251
    %p253 = scmp.ne.s32.totalorder %s245, %s248
    %p254 = scmp.eq.s32.totalorder %s15, 0
    %p255 = por %p253, %p254
    %p256 = scmp.ne.s32.totalorder %s245, %s248
    %p257 = scmp.eq.s32.totalorder %s20, 3
    %p258 = por %p256, %p257
    %p259 = scmp.ne.s32.totalorder %s248, %s249
    %p260 = scmp.eq.s32.totalorder %s20, 0
    %p261 = por %p259, %p260
    %p262 = scmp.ne.s32.totalorder %s248, %s249
    %p263 = scmp.eq.s32.totalorder %s21, 3
    %p264 = por %p262, %p263
    %p266 = scmp.ne.s32.totalorder %s249, %s265
    %p267 = scmp.eq.s32.totalorder %s21, 0
    %p268 = por %p266, %p267
    %s269 = ssub.s32 %s22, %s34
    %p270 = scmp.eq.s32.totalorder %s269, 0
    %s272 = sadd.s32 %s271, 1
    %s273 = scalar_select %p270, %s271, %s272
    %p276 = pneg %p270
    %p277 = scmp.eq.s32.totalorder %s15, 3
    %p278 = por %p276, %p277
    %p279 = scmp.ne.s32.totalorder %s271, %s274
    %p280 = scmp.eq.s32.totalorder %s15, 0
    %p281 = por %p279, %p280
    %p282 = scmp.ne.s32.totalorder %s271, %s274
    %p283 = scmp.eq.s32.totalorder %s20, 3
    %p284 = por %p282, %p283
    %p285 = scmp.ne.s32.totalorder %s274, %s275
    %p286 = scmp.eq.s32.totalorder %s20, 0
    %p287 = por %p285, %p286
    %p288 = scmp.ne.s32.totalorder %s274, %s275
    %p289 = scmp.eq.s32.totalorder %s21, 3
    %p290 = por %p288, %p289
    %p292 = scmp.ne.s32.totalorder %s275, %s291
    %p293 = scmp.eq.s32.totalorder %s21, 0
    %p294 = por %p292, %p293
    %p295 = scmp.le.s32.totalorder 1, %s15
    %p296 = scmp.lt.s32.totalorder %s15, 5
    %p297 = pnand %p295, %p296
    %p298 = pneg %p297
    // Predicated region
    $region9: #{tpu_custom_call.1} parent=5 // pred_check
      _
    $region10: #{tpu_custom_call.1} parent=5 // pred_check_branch
      %300 = sbr.rel (%p297) target = $region12
    $region11: #{tpu_custom_call.1} parent=5 // pred_region
      %s301 = ssub.s32 %s15, 1
    $region12: #{tpu_custom_call.1} parent=5 // pred_fallthru
      _
    %p302 = scmp.lt.s32.totalorder %s15, 4
    // Predicated region
    $region13: #{tpu_custom_call.1} parent=5 // pred_check
      %p303 = pneg %p302
    $region14: #{tpu_custom_call.1} parent=5 // pred_check_branch
      %305 = sbr.rel (%p303) target = $region16
    $region15: #{tpu_custom_call.1} parent=5 // pred_region
      // Predicated region
      $region17: #{tpu_custom_call.1} parent=15 // pred_check
        %p306 = pneg %p47
      $region18: #{tpu_custom_call.1} parent=15 // pred_check_branch
        %308 = sbr.rel (%p306) target = $region20
      $region19: #{tpu_custom_call.1} parent=15 // pred_region
        %s309 = smul.u32 4, %s22
        %p310 = scmp.lt.s32.totalorder %s309, 7
        %s311 = scalar_select %p310, %s309, 7
        %s312 = smul.addr %s311, 8
        %s313 = scalar_lea.vmem %s0, %s312
        %s314 = smul.u32 4, %s22
      $region20: #{tpu_custom_call.1} parent=15 // pred_fallthru
        _
      // Predicated region
      $region21: #{tpu_custom_call.1} parent=15 // pred_check
        %p315 = pneg %p73
      $region22: #{tpu_custom_call.1} parent=15 // pred_check_branch
        %317 = sbr.rel (%p315) target = $region24
      $region23: #{tpu_custom_call.1} parent=15 // pred_region
        %p318 = scmp.lt.s32.totalorder %s23, 1
        %s319 = scalar_select %p318, %s23, 1
        %s320 = smul.addr %s319, 8
        %s321 = scalar_lea.vmem %s1, %s320
      $region24: #{tpu_custom_call.1} parent=15 // pred_fallthru
        _
      // Predicated region
      $region25: #{tpu_custom_call.1} parent=15 // pred_check
        %p322 = pneg %p99
      $region26: #{tpu_custom_call.1} parent=15 // pred_check_branch
        %324 = sbr.rel (%p322) target = $region28
      $region27: #{tpu_custom_call.1} parent=15 // pred_region
        %p325 = scmp.lt.s32.totalorder %s23, 1
        %s326 = scalar_select %p325, %s23, 1
        %s327 = smul.addr %s326, 4
        %s328 = smul.addr %s327, 8
        %s329 = scalar_lea.vmem %s2, %s328
      $region28: #{tpu_custom_call.1} parent=15 // pred_fallthru
        _
      // Predicated region
      $region29: #{tpu_custom_call.1} parent=15 // pred_check
        %p330 = pneg %p125
      $region30: #{tpu_custom_call.1} parent=15 // pred_check_branch
        %332 = sbr.rel (%p330) target = $region32
      $region31: #{tpu_custom_call.1} parent=15 // pred_region
        %p333 = scmp.lt.s32.totalorder %s23, 1
        %s334 = scalar_select %p333, %s23, 1
        %s335 = smul.addr %s334, 4
        %s336 = smul.addr %s335, 8
        %s337 = scalar_lea.vmem %s3, %s336
      $region32: #{tpu_custom_call.1} parent=15 // pred_fallthru
        _
      // Predicated region
      $region33: #{tpu_custom_call.1} parent=15 // pred_check
        %p338 = pneg %p151
      $region34: #{tpu_custom_call.1} parent=15 // pred_check_branch
        %340 = sbr.rel (%p338) target = $region36
      $region35: #{tpu_custom_call.1} parent=15 // pred_region
        %p341 = scmp.lt.s32.totalorder %s23, 1
        %s342 = scalar_select %p341, %s23, 1
        %s343 = smul.addr %s342, 4
        %s344 = smul.addr %s343, 8
        %s345 = scalar_lea.vmem %s4, %s344
      $region36: #{tpu_custom_call.1} parent=15 // pred_fallthru
        _
      // Predicated region
      $region37: #{tpu_custom_call.1} parent=15 // pred_check
        %p346 = pneg %p177
      $region38: #{tpu_custom_call.1} parent=15 // pred_check_branch
        %348 = sbr.rel (%p346) target = $region40
      $region39: #{tpu_custom_call.1} parent=15 // pred_region
        %p349 = scmp.lt.s32.totalorder %s23, 1
        %s350 = scalar_select %p349, %s23, 1
        %s351 = smul.addr %s350, 8
        %s352 = smul.addr %s351, 8
        %s353 = scalar_lea.vmem %s5, %s352
      $region40: #{tpu_custom_call.1} parent=15 // pred_fallthru
        _
      // Predicated region
      $region41: #{tpu_custom_call.1} parent=15 // pred_check
        %p354 = pneg %p203
      $region42: #{tpu_custom_call.1} parent=15 // pred_check_branch
        %356 = sbr.rel (%p354) target = $region44
      $region43: #{tpu_custom_call.1} parent=15 // pred_region
        %p357 = scmp.lt.s32.totalorder %s23, 1
        %s358 = scalar_select %p357, %s23, 1
        %s359 = smul.addr %s358, 8
        %s360 = scalar_lea.vmem %s6, %s359
      $region44: #{tpu_custom_call.1} parent=15 // pred_fallthru
        _
      // Predicated region
      $region45: #{tpu_custom_call.1} parent=15 // pred_check
        %p361 = pneg %p229
      $region46: #{tpu_custom_call.1} parent=15 // pred_check_branch
        %363 = sbr.rel (%p361) target = $region48
      $region47: #{tpu_custom_call.1} parent=15 // pred_region
        %p364 = scmp.lt.s32.totalorder %s23, 1
        %s365 = scalar_select %p364, %s23, 1
        %s366 = smul.addr %s365, 2
        %s367 = scalar_lea.vmem %s7, %s366
      $region48: #{tpu_custom_call.1} parent=15 // pred_fallthru
        _
      // Predicated region
      $region49: #{tpu_custom_call.1} parent=15 // pred_check
        %p368 = pneg %p255
      $region50: #{tpu_custom_call.1} parent=15 // pred_check_branch
        %370 = sbr.rel (%p368) target = $region52
      $region51: #{tpu_custom_call.1} parent=15 // pred_region
        %p371 = scmp.lt.s32.totalorder %s23, 1
        %s372 = scalar_select %p371, %s23, 1
        %s373 = scalar_lea.vmem %s8, %s372
      $region52: #{tpu_custom_call.1} parent=15 // pred_fallthru
        _
    $region16: #{tpu_custom_call.1} parent=5 // pred_fallthru
      _
    %p374 = scmp.le.s32.totalorder 1, %s15
    %p375 = scmp.lt.s32.totalorder %s15, 5
    %p376 = pnand %p374, %p375
    %p377 = pneg %p376
    // Predicated region
    $region53: #{tpu_custom_call.1} parent=5 // pred_check
      _
    $region54: #{tpu_custom_call.1} parent=5 // pred_check_branch
      %379 = sbr.rel (%p376) target = $region56
    $region55: #{tpu_custom_call.1} parent=5 // pred_region
      %s380 = ssub.s32 %s15, 1
      %s381 = smul.u32 4, %s24
      %p382 = scmp.lt.s32.totalorder %s381, 7
      %s383 = scalar_select %p382, %s381, 7
      %s384 = smul.addr %s383, 8
      %s385 = scalar_lea.vmem %s0, %s384
      %p386 = pneg %p53
      %p387 = pneg %p50
      %p388 = scmp.lt.s32.totalorder %s25, 1
      %s389 = scalar_select %p388, %s25, 1
      %s390 = smul.addr %s389, 8
      %s391 = scalar_lea.vmem %s1, %s390
      %p392 = pneg %p79
      %p393 = pneg %p76
      %p394 = scmp.lt.s32.totalorder %s25, 1
      %s395 = scalar_select %p394, %s25, 1
      %s396 = smul.addr %s395, 4
      %s397 = smul.addr %s396, 8
      %s398 = scalar_lea.vmem %s2, %s397
      %p399 = pneg %p105
      %p400 = pneg %p102
      %p401 = scmp.lt.s32.totalorder %s25, 1
      %s402 = scalar_select %p401, %s25, 1
      %s403 = smul.addr %s402, 4
      %s404 = smul.addr %s403, 8
      %s405 = scalar_lea.vmem %s3, %s404
      %p406 = pneg %p131
      %p407 = pneg %p128
      %p408 = scmp.lt.s32.totalorder %s25, 1
      %s409 = scalar_select %p408, %s25, 1
      %s410 = smul.addr %s409, 4
      %s411 = smul.addr %s410, 8
      %s412 = scalar_lea.vmem %s4, %s411
      %p413 = pneg %p157
      %p414 = pneg %p154
      %p415 = scmp.lt.s32.totalorder %s25, 1
      %s416 = scalar_select %p415, %s25, 1
      %s417 = smul.addr %s416, 8
      %s418 = smul.addr %s417, 8
      %s419 = scalar_lea.vmem %s5, %s418
      %p420 = pneg %p183
      %p421 = pneg %p180
      %p422 = scmp.lt.s32.totalorder %s25, 1
      %s423 = scalar_select %p422, %s25, 1
      %s424 = smul.addr %s423, 8
      %s425 = scalar_lea.vmem %s6, %s424
      %p426 = pneg %p209
      %p427 = pneg %p206
      %p428 = scmp.lt.s32.totalorder %s25, 1
      %s429 = scalar_select %p428, %s25, 1
      %s430 = smul.addr %s429, 2
      %s431 = scalar_lea.vmem %s7, %s430
      %p432 = pneg %p235
      %p433 = pneg %p232
      %p434 = scmp.lt.s32.totalorder %s25, 1
      %s435 = scalar_select %p434, %s25, 1
      %s436 = scalar_lea.vmem %s8, %s435
      %p437 = pneg %p261
      %p438 = pneg %p258
      %p439 = pneg %p287
      %p440 = pneg %p284
      %s441 = smul.u32 4, %s24
      %p442 = scmp.lt.s32.totalorder %s441, 7
      %s443 = scalar_select %p442, %s441, 7
      %s444 = smul.addr %s443, 8
      %s445 = scalar_lea.vmem %s9, %s444
      %s446 = smul.u32 4, %s24
      %p447 = scmp.lt.s32.totalorder %s446, 7
      %s448 = scalar_select %p447, %s446, 7
      %s449 = smul.addr %s448, 8
      %s450 = scalar_lea.vmem %s0, %s449
      %s451 = smul.u32 4, %s24
      %p452 = scmp.lt.s32.totalorder %s25, 1
      %s453 = scalar_select %p452, %s25, 1
      %s454 = smul.addr %s453, 8
      %s455 = scalar_lea.vmem %s1, %s454
      %p456 = scmp.lt.s32.totalorder %s25, 1
      %s457 = scalar_select %p456, %s25, 1
      %s458 = smul.addr %s457, 4
      %s459 = smul.addr %s458, 8
      %s460 = scalar_lea.vmem %s2, %s459
      %p461 = scmp.lt.s32.totalorder %s25, 1
      %s462 = scalar_select %p461, %s25, 1
      %s463 = smul.addr %s462, 4
      %s464 = smul.addr %s463, 8
      %s465 = scalar_lea.vmem %s3, %s464
      %p466 = scmp.lt.s32.totalorder %s25, 1
      %s467 = scalar_select %p466, %s25, 1
      %s468 = smul.addr %s467, 4
      %s469 = smul.addr %s468, 8
      %s470 = scalar_lea.vmem %s4, %s469
      %p471 = scmp.lt.s32.totalorder %s25, 1
      %s472 = scalar_select %p471, %s25, 1
      %s473 = smul.addr %s472, 8
      %s474 = smul.addr %s473, 8
      %s475 = scalar_lea.vmem %s5, %s474
      %p476 = scmp.lt.s32.totalorder %s25, 1
      %s477 = scalar_select %p476, %s25, 1
      %s478 = smul.addr %s477, 8
      %s479 = scalar_lea.vmem %s6, %s478
      %p480 = scmp.lt.s32.totalorder %s25, 1
      %s481 = scalar_select %p480, %s25, 1
      %s482 = smul.addr %s481, 2
      %s483 = scalar_lea.vmem %s7, %s482
      %p484 = scmp.lt.s32.totalorder %s25, 1
      %s485 = scalar_select %p484, %s25, 1
      %s486 = scalar_lea.vmem %s8, %s485
      %s487 = smul.u32 4, %s24
      %p488 = scmp.lt.s32.totalorder %s487, 7
      %s489 = scalar_select %p488, %s487, 7
      %s490 = smul.addr %s489, 8
      %s491 = scalar_lea.vmem %s9, %s490
      %s492 = smul.u32 4, %s24
      %p493 = scmp.eq.s32.totalorder %s25, 0
      // Predicated region
      $region57: #{tpu_custom_call.1} parent=55 // pred_check
        %p494 = pneg %p493
      $region58: #{tpu_custom_call.1} parent=55 // pred_check_branch
        %496 = sbr.rel (%p494) target = $region60
      $region59: #{tpu_custom_call.1} parent=55 // pred_region
        %v497 = vld [vmem:[%s450] sm:$0xff]
        %v498 = vld [vmem:[%s450 + $0x8] sm:$0xff]
        %v499 = vld [vmem:[%s450 + $0x10] sm:$0xff]
        %v500 = vld [vmem:[%s450 + $0x18] sm:$0xff]
        %vm501 = vcmask 261120
        %502 = vst.msk [vmem:[%s491] sm:$0xff] %vm501, %v497
        %503 = vst.msk [vmem:[%s491 + $0x8] sm:$0xff] %vm501, %v498
        %504 = vst.msk [vmem:[%s491 + $0x10] sm:$0xff] %vm501, %v499
        %505 = vst.msk [vmem:[%s491 + $0x18] sm:$0xff] %vm501, %v500
      $region60: #{tpu_custom_call.1} parent=55 // pred_fallthru
        _
      %v506 = vld [vmem:[%s491] sm:$0xff]
      %v507 = vld [vmem:[%s491 + $0x8] sm:$0xff]
      %v508 = vld [vmem:[%s491 + $0x10] sm:$0xff]
      %v509 = vld [vmem:[%s491 + $0x18] sm:$0xff]
      %v510 = vld [vmem:[%s455] sm:$0xff]
      %v511 = vadd.f32 %v506, %v510
      %v512 = vadd.f32 %v507, %v510
      %v513 = vadd.f32 %v508, %v510
      %v514 = vadd.f32 %v509, %v510
      %v515 = vld [vmem:[%s460] sm:$0xff]
      %v516 = vld [vmem:[%s460 + $0x8] sm:$0xff]
      %v517 = vld [vmem:[%s460 + $0x10] sm:$0xff]
      %v518 = vld [vmem:[%s460 + $0x18] sm:$0xff]
      %vm519 = vcmask 261120
      %v521 = vsel %vm519, %v511, 0
      %v524 = vsel %vm519, %v512, 0
      %v527 = vsel %vm519, %v513, 0
      %v530 = vsel %vm519, %v514, 0
      %532 = vmatpush.msra.mxu0 0.0
      %533 = vmatpush.msra.mxu0 0.0
      %534 = vmatpush.msra.mxu0 0.0
      %535 = vmatpush.msra.mxu0 0.0
      %536 = vmatpush.msra.mxu0 0.0
      %537 = vmatpush.msra.mxu0 0.0
      %538 = vmatpush.msra.mxu0 0.0
      %539 = vmatpush.msra.mxu0 0.0
      %540 = vmatpush.msra.mxu0 0.0
      %541 = vmatpush.msra.mxu0 0.0
      %542 = vmatpush.msra.mxu0 0.0
      %543 = vmatpush.msra.mxu0 0.0
      %544 = vmatpush.msra.mxu0 %v518
      %545 = vmatpush.msra.mxu0 %v517
      %546 = vmatpush.msra.mxu0 %v516
      %547 = vmatpush.msra.mxu0 %v515
      %548 = vmatmul.f32.gmra.mxu0 %v521
      %v549 = vpop.f32.mrf.mxu0
      %v550 = vadd.f32 0.0, %v549
      %551 = vmatmul.f32.gmra.mxu0 %v524
      %v552 = vpop.f32.mrf.mxu0
      %v553 = vadd.f32 0.0, %v552
      %554 = vmatmul.f32.gmra.mxu0 %v527
      %v555 = vpop.f32.mrf.mxu0
      %v556 = vadd.f32 0.0, %v555
      %557 = vmatmul.f32.gmra.mxu0 %v530
      %v558 = vpop.f32.mrf.mxu0
      %v559 = vadd.f32 0.0, %v558
      %560 = vdwg.mxu0
      %562 = vrot.lane.b32.xlu0 %v550, 96
      %v563 = vpop.permute.xlu0 %562
      %vm564 = vcmask 64512
      %v565 = vsel %vm564, %v550, 0
      %v567 = vsel %vm564, %v563, 0
      %569 = vmatpush.xpose.msra.mxu0 0.0
      %570 = vmatpush.xpose.msra.mxu0 0.0
      %571 = vmatpush.xpose.msra.mxu0 0.0
      %572 = vmatpush.xpose.msra.mxu0 0.0
      %573 = vmatpush.xpose.msra.mxu0 0.0
      %574 = vmatpush.xpose.msra.mxu0 0.0
      %575 = vmatpush.xpose.msra.mxu0 0.0
      %576 = vmatpush.xpose.msra.mxu0 0.0
      %577 = vmatpush.xpose.msra.mxu0 0.0
      %578 = vmatpush.xpose.msra.mxu0 0.0
      %579 = vmatpush.xpose.msra.mxu0 0.0
      %580 = vmatpush.xpose.msra.mxu0 0.0
      %581 = vmatpush.xpose.msra.mxu0 0.0
      %582 = vmatpush.xpose.msra.mxu0 0.0
      %583 = vmatpush.xpose.msra.mxu0 0.0
      %584 = vmatpush.xpose.msra.mxu0 %v567
      %585 = vmatmul.f32.gmra.mxu0 %v565
      %v586 = vpop.f32.mrf.mxu0
      %v587 = vadd.f32 0.0, %v586
      %588 = vdwg.mxu0
      %590 = vrot.lane.b32.xlu0 %v553, 96
      %v591 = vpop.permute.xlu0 %590
      %v592 = vsel %vm564, %v553, 0
      %v594 = vsel %vm564, %v591, 0
      %596 = vmatpush.xpose.msra.mxu0 0.0
      %597 = vmatpush.xpose.msra.mxu0 0.0
      %598 = vmatpush.xpose.msra.mxu0 0.0
      %599 = vmatpush.xpose.msra.mxu0 0.0
      %600 = vmatpush.xpose.msra.mxu0 0.0
      %601 = vmatpush.xpose.msra.mxu0 0.0
      %602 = vmatpush.xpose.msra.mxu0 0.0
      %603 = vmatpush.xpose.msra.mxu0 0.0
      %604 = vmatpush.xpose.msra.mxu0 0.0
      %605 = vmatpush.xpose.msra.mxu0 0.0
      %606 = vmatpush.xpose.msra.mxu0 0.0
      %607 = vmatpush.xpose.msra.mxu0 0.0
      %608 = vmatpush.xpose.msra.mxu0 0.0
      %609 = vmatpush.xpose.msra.mxu0 0.0
      %610 = vmatpush.xpose.msra.mxu0 0.0
      %611 = vmatpush.xpose.msra.mxu0 %v594
      %612 = vmatmul.f32.gmra.mxu0 %v592
      %v613 = vpop.f32.mrf.mxu0
      %v614 = vadd.f32 0.0, %v613
      %615 = vdwg.mxu0
      %617 = vrot.lane.b32.xlu0 %v556, 96
      %v618 = vpop.permute.xlu0 %617
      %v619 = vsel %vm564, %v556, 0
      %v621 = vsel %vm564, %v618, 0
      %623 = vmatpush.xpose.msra.mxu0 0.0
      %624 = vmatpush.xpose.msra.mxu0 0.0
      %625 = vmatpush.xpose.msra.mxu0 0.0
      %626 = vmatpush.xpose.msra.mxu0 0.0
      %627 = vmatpush.xpose.msra.mxu0 0.0
      %628 = vmatpush.xpose.msra.mxu0 0.0
      %629 = vmatpush.xpose.msra.mxu0 0.0
      %630 = vmatpush.xpose.msra.mxu0 0.0
      %631 = vmatpush.xpose.msra.mxu0 0.0
      %632 = vmatpush.xpose.msra.mxu0 0.0
      %633 = vmatpush.xpose.msra.mxu0 0.0
      %634 = vmatpush.xpose.msra.mxu0 0.0
      %635 = vmatpush.xpose.msra.mxu0 0.0
      %636 = vmatpush.xpose.msra.mxu0 0.0
      %637 = vmatpush.xpose.msra.mxu0 0.0
      %638 = vmatpush.xpose.msra.mxu0 %v621
      %639 = vmatmul.f32.gmra.mxu0 %v619
      %v640 = vpop.f32.mrf.mxu0
      %v641 = vadd.f32 0.0, %v640
      %642 = vdwg.mxu0
      %644 = vrot.lane.b32.xlu0 %v559, 96
      %v645 = vpop.permute.xlu0 %644
      %v646 = vsel %vm564, %v559, 0
      %v648 = vsel %vm564, %v645, 0
      %650 = vmatpush.xpose.msra.mxu0 0.0
      %651 = vmatpush.xpose.msra.mxu0 0.0
      %652 = vmatpush.xpose.msra.mxu0 0.0
      %653 = vmatpush.xpose.msra.mxu0 0.0
      %654 = vmatpush.xpose.msra.mxu0 0.0
      %655 = vmatpush.xpose.msra.mxu0 0.0
      %656 = vmatpush.xpose.msra.mxu0 0.0
      %657 = vmatpush.xpose.msra.mxu0 0.0
      %658 = vmatpush.xpose.msra.mxu0 0.0
      %659 = vmatpush.xpose.msra.mxu0 0.0
      %660 = vmatpush.xpose.msra.mxu0 0.0
      %661 = vmatpush.xpose.msra.mxu0 0.0
      %662 = vmatpush.xpose.msra.mxu0 0.0
      %663 = vmatpush.xpose.msra.mxu0 0.0
      %664 = vmatpush.xpose.msra.mxu0 0.0
      %665 = vmatpush.xpose.msra.mxu0 %v648
      %666 = vmatmul.f32.gmra.mxu0 %v646
      %v667 = vpop.f32.mrf.mxu0
      %v668 = vadd.f32 0.0, %v667
      %669 = vdwg.mxu0
      %v670 = vmul.f32 %v587, 0.35355338
      %v671 = vmul.f32 %v614, 0.35355338
      %v672 = vmul.f32 %v641, 0.35355338
      %v673 = vmul.f32 %v668, 0.35355338
      %v674 = vsel %vm564, %v670, -inf
      %675 = vmax.xlane.f32.xlu0 %v674
      %v676 = vpop.xlane.xlu0 %675
      %v677 = vsel %vm564, %v671, -inf
      %678 = vmax.xlane.f32.xlu0 %v677
      %v679 = vpop.xlane.xlu0 %678
      %v680 = vsel %vm564, %v672, -inf
      %681 = vmax.xlane.f32.xlu0 %v680
      %v682 = vpop.xlane.xlu0 %681
      %v683 = vsel %vm564, %v673, -inf
      %684 = vmax.xlane.f32.xlu0 %v683
      %v685 = vpop.xlane.xlu0 %684
      %v686 = vsub.f32 %v670, %v676
      %v687 = vsub.f32 %v671, %v679
      %v688 = vsub.f32 %v672, %v682
      %v689 = vsub.f32 %v673, %v685
      %v690 = vmul.f32 %v686, 1.442695
      %v691 = vpow.pop %v690
      %v692 = vmul.f32 %v687, 1.442695
      %v693 = vpow.pop %v692
      %v694 = vmul.f32 %v688, 1.442695
      %v695 = vpow.pop %v694
      %v696 = vmul.f32 %v689, 1.442695
      %v697 = vpow.pop %v696
      %v698 = vsel %vm564, %v691, 0.0
      %699 = vadd.xlane.f32.xlu0 %v698
      %v700 = vpop.xlane.xlu0 %699
      %v701 = vsel %vm564, %v693, 0.0
      %702 = vadd.xlane.f32.xlu0 %v701
      %v703 = vpop.xlane.xlu0 %702
      %v704 = vsel %vm564, %v695, 0.0
      %705 = vadd.xlane.f32.xlu0 %v704
      %v706 = vpop.xlane.xlu0 %705
      %v707 = vsel %vm564, %v697, 0.0
      %708 = vadd.xlane.f32.xlu0 %v707
      %v709 = vpop.xlane.xlu0 %708
      %v710 = vrcp.pop %v700
      %v711 = vrcp.pop %v703
      %v712 = vrcp.pop %v706
      %v713 = vrcp.pop %v709
      %v714 = vmul.f32 %v691, %v710
      %v715 = vmul.f32 %v693, %v711
      %v716 = vmul.f32 %v695, %v712
      %v717 = vmul.f32 %v697, %v713
      %718 = vrot.lane.b32.xlu0 %v550, 64
      %v719 = vpop.permute.xlu0 %718
      %v722 = vsel %vm564, %v714, 0
      %724 = vmatpush.msra.mxu0 0.0
      %725 = vmatpush.msra.mxu0 0.0
      %726 = vmatpush.msra.mxu0 0.0
      %727 = vmatpush.msra.mxu0 0.0
      %728 = vmatpush.msra.mxu0 0.0
      %729 = vmatpush.msra.mxu0 0.0
      %730 = vmatpush.msra.mxu0 0.0
      %731 = vmatpush.msra.mxu0 0.0
      %732 = vmatpush.msra.mxu0 0.0
      %733 = vmatpush.msra.mxu0 0.0
      %734 = vmatpush.msra.mxu0 0.0
      %735 = vmatpush.msra.mxu0 0.0
      %736 = vmatpush.msra.mxu0 0.0
      %737 = vmatpush.msra.mxu0 0.0
      %738 = vmatpush.msra.mxu0 0.0
      %739 = vmatpush.msra.mxu0 %v719
      %740 = vmatmul.f32.gmra.mxu0 %v722
      %v741 = vpop.f32.mrf.mxu0
      %v742 = vadd.f32 0.0, %v741
      %743 = vdwg.mxu0
      %744 = vrot.lane.b32.xlu0 %v553, 64
      %v745 = vpop.permute.xlu0 %744
      %v748 = vsel %vm564, %v715, 0
      %750 = vmatpush.msra.mxu0 0.0
      %751 = vmatpush.msra.mxu0 0.0
      %752 = vmatpush.msra.mxu0 0.0
      %753 = vmatpush.msra.mxu0 0.0
      %754 = vmatpush.msra.mxu0 0.0
      %755 = vmatpush.msra.mxu0 0.0
      %756 = vmatpush.msra.mxu0 0.0
      %757 = vmatpush.msra.mxu0 0.0
      %758 = vmatpush.msra.mxu0 0.0
      %759 = vmatpush.msra.mxu0 0.0
      %760 = vmatpush.msra.mxu0 0.0
      %761 = vmatpush.msra.mxu0 0.0
      %762 = vmatpush.msra.mxu0 0.0
      %763 = vmatpush.msra.mxu0 0.0
      %764 = vmatpush.msra.mxu0 0.0
      %765 = vmatpush.msra.mxu0 %v745
      %766 = vmatmul.f32.gmra.mxu0 %v748
      %v767 = vpop.f32.mrf.mxu0
      %v768 = vadd.f32 0.0, %v767
      %769 = vdwg.mxu0
      %770 = vrot.lane.b32.xlu0 %v556, 64
      %v771 = vpop.permute.xlu0 %770
      %v774 = vsel %vm564, %v716, 0
      %776 = vmatpush.msra.mxu0 0.0
      %777 = vmatpush.msra.mxu0 0.0
      %778 = vmatpush.msra.mxu0 0.0
      %779 = vmatpush.msra.mxu0 0.0
      %780 = vmatpush.msra.mxu0 0.0
      %781 = vmatpush.msra.mxu0 0.0
      %782 = vmatpush.msra.mxu0 0.0
      %783 = vmatpush.msra.mxu0 0.0
      %784 = vmatpush.msra.mxu0 0.0
      %785 = vmatpush.msra.mxu0 0.0
      %786 = vmatpush.msra.mxu0 0.0
      %787 = vmatpush.msra.mxu0 0.0
      %788 = vmatpush.msra.mxu0 0.0
      %789 = vmatpush.msra.mxu0 0.0
      %790 = vmatpush.msra.mxu0 0.0
      %791 = vmatpush.msra.mxu0 %v771
      %792 = vmatmul.f32.gmra.mxu0 %v774
      %v793 = vpop.f32.mrf.mxu0
      %v794 = vadd.f32 0.0, %v793
      %795 = vdwg.mxu0
      %796 = vrot.lane.b32.xlu0 %v559, 64
      %v797 = vpop.permute.xlu0 %796
      %v800 = vsel %vm564, %v717, 0
      %802 = vmatpush.msra.mxu0 0.0
      %803 = vmatpush.msra.mxu0 0.0
      %804 = vmatpush.msra.mxu0 0.0
      %805 = vmatpush.msra.mxu0 0.0
      %806 = vmatpush.msra.mxu0 0.0
      %807 = vmatpush.msra.mxu0 0.0
      %808 = vmatpush.msra.mxu0 0.0
      %809 = vmatpush.msra.mxu0 0.0
      %810 = vmatpush.msra.mxu0 0.0
      %811 = vmatpush.msra.mxu0 0.0
      %812 = vmatpush.msra.mxu0 0.0
      %813 = vmatpush.msra.mxu0 0.0
      %814 = vmatpush.msra.mxu0 0.0
      %815 = vmatpush.msra.mxu0 0.0
      %816 = vmatpush.msra.mxu0 0.0
      %817 = vmatpush.msra.mxu0 %v797
      %818 = vmatmul.f32.gmra.mxu0 %v800
      %v819 = vpop.f32.mrf.mxu0
      %v820 = vadd.f32 0.0, %v819
      %821 = vdwg.mxu0
      %822 = vrot.lane.b32.xlu0 %v550, 120
      %v823 = vpop.permute.xlu0 %822
      %824 = vrot.lane.b32.xlu0 %v550, 88
      %v825 = vpop.permute.xlu0 %824
      %v826 = vsel %vm564, %v823, 0
      %v828 = vsel %vm564, %v825, 0
      %830 = vmatpush.xpose.msra.mxu0 0.0
      %831 = vmatpush.xpose.msra.mxu0 0.0
      %832 = vmatpush.xpose.msra.mxu0 0.0
      %833 = vmatpush.xpose.msra.mxu0 0.0
      %834 = vmatpush.xpose.msra.mxu0 0.0
      %835 = vmatpush.xpose.msra.mxu0 0.0
      %836 = vmatpush.xpose.msra.mxu0 0.0
      %837 = vmatpush.xpose.msra.mxu0 0.0
      %838 = vmatpush.xpose.msra.mxu0 0.0
      %839 = vmatpush.xpose.msra.mxu0 0.0
      %840 = vmatpush.xpose.msra.mxu0 0.0
      %841 = vmatpush.xpose.msra.mxu0 0.0
      %842 = vmatpush.xpose.msra.mxu0 0.0
      %843 = vmatpush.xpose.msra.mxu0 0.0
      %844 = vmatpush.xpose.msra.mxu0 0.0
      %845 = vmatpush.xpose.msra.mxu0 %v828
      %846 = vmatmul.f32.gmra.mxu0 %v826
      %v847 = vpop.f32.mrf.mxu0
      %v848 = vadd.f32 0.0, %v847
      %849 = vdwg.mxu0
      %850 = vrot.lane.b32.xlu0 %v553, 120
      %v851 = vpop.permute.xlu0 %850
      %852 = vrot.lane.b32.xlu0 %v553, 88
      %v853 = vpop.permute.xlu0 %852
      %v854 = vsel %vm564, %v851, 0
      %v856 = vsel %vm564, %v853, 0
      %858 = vmatpush.xpose.msra.mxu0 0.0
      %859 = vmatpush.xpose.msra.mxu0 0.0
      %860 = vmatpush.xpose.msra.mxu0 0.0
      %861 = vmatpush.xpose.msra.mxu0 0.0
      %862 = vmatpush.xpose.msra.mxu0 0.0
      %863 = vmatpush.xpose.msra.mxu0 0.0
      %864 = vmatpush.xpose.msra.mxu0 0.0
      %865 = vmatpush.xpose.msra.mxu0 0.0
      %866 = vmatpush.xpose.msra.mxu0 0.0
      %867 = vmatpush.xpose.msra.mxu0 0.0
      %868 = vmatpush.xpose.msra.mxu0 0.0
      %869 = vmatpush.xpose.msra.mxu0 0.0
      %870 = vmatpush.xpose.msra.mxu0 0.0
      %871 = vmatpush.xpose.msra.mxu0 0.0
      %872 = vmatpush.xpose.msra.mxu0 0.0
      %873 = vmatpush.xpose.msra.mxu0 %v856
      %874 = vmatmul.f32.gmra.mxu0 %v854
      %v875 = vpop.f32.mrf.mxu0
      %v876 = vadd.f32 0.0, %v875
      %877 = vdwg.mxu0
      %878 = vrot.lane.b32.xlu0 %v556, 120
      %v879 = vpop.permute.xlu0 %878
      %880 = vrot.lane.b32.xlu0 %v556, 88
      %v881 = vpop.permute.xlu0 %880
      %v882 = vsel %vm564, %v879, 0
      %v884 = vsel %vm564, %v881, 0
      %886 = vmatpush.xpose.msra.mxu0 0.0
      %887 = vmatpush.xpose.msra.mxu0 0.0
      %888 = vmatpush.xpose.msra.mxu0 0.0
      %889 = vmatpush.xpose.msra.mxu0 0.0
      %890 = vmatpush.xpose.msra.mxu0 0.0
      %891 = vmatpush.xpose.msra.mxu0 0.0
      %892 = vmatpush.xpose.msra.mxu0 0.0
      %893 = vmatpush.xpose.msra.mxu0 0.0
      %894 = vmatpush.xpose.msra.mxu0 0.0
      %895 = vmatpush.xpose.msra.mxu0 0.0
      %896 = vmatpush.xpose.msra.mxu0 0.0
      %897 = vmatpush.xpose.msra.mxu0 0.0
      %898 = vmatpush.xpose.msra.mxu0 0.0
      %899 = vmatpush.xpose.msra.mxu0 0.0
      %900 = vmatpush.xpose.msra.mxu0 0.0
      %901 = vmatpush.xpose.msra.mxu0 %v884
      %902 = vmatmul.f32.gmra.mxu0 %v882
      %v903 = vpop.f32.mrf.mxu0
      %v904 = vadd.f32 0.0, %v903
      %905 = vdwg.mxu0
      %906 = vrot.lane.b32.xlu0 %v559, 120
      %v907 = vpop.permute.xlu0 %906
      %908 = vrot.lane.b32.xlu0 %v559, 88
      %v909 = vpop.permute.xlu0 %908
      %v910 = vsel %vm564, %v907, 0
      %v912 = vsel %vm564, %v909, 0
      %914 = vmatpush.xpose.msra.mxu0 0.0
      %915 = vmatpush.xpose.msra.mxu0 0.0
      %916 = vmatpush.xpose.msra.mxu0 0.0
      %917 = vmatpush.xpose.msra.mxu0 0.0
      %918 = vmatpush.xpose.msra.mxu0 0.0
      %919 = vmatpush.xpose.msra.mxu0 0.0
      %920 = vmatpush.xpose.msra.mxu0 0.0
      %921 = vmatpush.xpose.msra.mxu0 0.0
      %922 = vmatpush.xpose.msra.mxu0 0.0
      %923 = vmatpush.xpose.msra.mxu0 0.0
      %924 = vmatpush.xpose.msra.mxu0 0.0
      %925 = vmatpush.xpose.msra.mxu0 0.0
      %926 = vmatpush.xpose.msra.mxu0 0.0
      %927 = vmatpush.xpose.msra.mxu0 0.0
      %928 = vmatpush.xpose.msra.mxu0 0.0
      %929 = vmatpush.xpose.msra.mxu0 %v912
      %930 = vmatmul.f32.gmra.mxu0 %v910
      %v931 = vpop.f32.mrf.mxu0
      %v932 = vadd.f32 0.0, %v931
      %933 = vdwg.mxu0
      %v934 = vmul.f32 %v848, 0.35355338
      %v935 = vmul.f32 %v876, 0.35355338
      %v936 = vmul.f32 %v904, 0.35355338
      %v937 = vmul.f32 %v932, 0.35355338
      %v938 = vsel %vm564, %v934, -inf
      %939 = vmax.xlane.f32.xlu0 %v938
      %v940 = vpop.xlane.xlu0 %939
      %v941 = vsel %vm564, %v935, -inf
      %942 = vmax.xlane.f32.xlu0 %v941
      %v943 = vpop.xlane.xlu0 %942
      %v944 = vsel %vm564, %v936, -inf
      %945 = vmax.xlane.f32.xlu0 %v944
      %v946 = vpop.xlane.xlu0 %945
      %v947 = vsel %vm564, %v937, -inf
      %948 = vmax.xlane.f32.xlu0 %v947
      %v949 = vpop.xlane.xlu0 %948
      %v950 = vsub.f32 %v934, %v940
      %v951 = vsub.f32 %v935, %v943
      %v952 = vsub.f32 %v936, %v946
      %v953 = vsub.f32 %v937, %v949
      %v954 = vmul.f32 %v950, 1.442695
      %v955 = vpow.pop %v954
      %v956 = vmul.f32 %v951, 1.442695
      %v957 = vpow.pop %v956
      %v958 = vmul.f32 %v952, 1.442695
      %v959 = vpow.pop %v958
      %v960 = vmul.f32 %v953, 1.442695
      %v961 = vpow.pop %v960
      %v962 = vsel %vm564, %v955, 0.0
      %963 = vadd.xlane.f32.xlu0 %v962
      %v964 = vpop.xlane.xlu0 %963
      %v965 = vsel %vm564, %v957, 0.0
      %966 = vadd.xlane.f32.xlu0 %v965
      %v967 = vpop.xlane.xlu0 %966
      %v968 = vsel %vm564, %v959, 0.0
      %969 = vadd.xlane.f32.xlu0 %v968
      %v970 = vpop.xlane.xlu0 %969
      %v971 = vsel %vm564, %v961, 0.0
      %972 = vadd.xlane.f32.xlu0 %v971
      %v973 = vpop.xlane.xlu0 %972
      %v974 = vrcp.pop %v964
      %v975 = vrcp.pop %v967
      %v976 = vrcp.pop %v970
      %v977 = vrcp.pop %v973
      %v978 = vmul.f32 %v955, %v974
      %v979 = vmul.f32 %v957, %v975
      %v980 = vmul.f32 %v959, %v976
      %v981 = vmul.f32 %v961, %v977
      %982 = vrot.lane.b32.xlu0 %v550, 56
      %v983 = vpop.permute.xlu0 %982
      %v986 = vsel %vm564, %v978, 0
      %988 = vmatpush.msra.mxu0 0.0
      %989 = vmatpush.msra.mxu0 0.0
      %990 = vmatpush.msra.mxu0 0.0
      %991 = vmatpush.msra.mxu0 0.0
      %992 = vmatpush.msra.mxu0 0.0
      %993 = vmatpush.msra.mxu0 0.0
      %994 = vmatpush.msra.mxu0 0.0
      %995 = vmatpush.msra.mxu0 0.0
      %996 = vmatpush.msra.mxu0 0.0
      %997 = vmatpush.msra.mxu0 0.0
      %998 = vmatpush.msra.mxu0 0.0
      %999 = vmatpush.msra.mxu0 0.0
      %1000 = vmatpush.msra.mxu0 0.0
      %1001 = vmatpush.msra.mxu0 0.0
      %1002 = vmatpush.msra.mxu0 0.0
      %1003 = vmatpush.msra.mxu0 %v983
      %1004 = vmatmul.f32.gmra.mxu0 %v986
      %v1005 = vpop.f32.mrf.mxu0
      %v1006 = vadd.f32 0.0, %v1005
      %1007 = vdwg.mxu0
      %1008 = vrot.lane.b32.xlu0 %v553, 56
      %v1009 = vpop.permute.xlu0 %1008
      %v1012 = vsel %vm564, %v979, 0
      %1014 = vmatpush.msra.mxu0 0.0
      %1015 = vmatpush.msra.mxu0 0.0
      %1016 = vmatpush.msra.mxu0 0.0
      %1017 = vmatpush.msra.mxu0 0.0
      %1018 = vmatpush.msra.mxu0 0.0
      %1019 = vmatpush.msra.mxu0 0.0
      %1020 = vmatpush.msra.mxu0 0.0
      %1021 = vmatpush.msra.mxu0 0.0
      %1022 = vmatpush.msra.mxu0 0.0
      %1023 = vmatpush.msra.mxu0 0.0
      %1024 = vmatpush.msra.mxu0 0.0
      %1025 = vmatpush.msra.mxu0 0.0
      %1026 = vmatpush.msra.mxu0 0.0
      %1027 = vmatpush.msra.mxu0 0.0
      %1028 = vmatpush.msra.mxu0 0.0
      %1029 = vmatpush.msra.mxu0 %v1009
      %1030 = vmatmul.f32.gmra.mxu0 %v1012
      %v1031 = vpop.f32.mrf.mxu0
      %v1032 = vadd.f32 0.0, %v1031
      %1033 = vdwg.mxu0
      %1034 = vrot.lane.b32.xlu0 %v556, 56
      %v1035 = vpop.permute.xlu0 %1034
      %v1038 = vsel %vm564, %v980, 0
      %1040 = vmatpush.msra.mxu0 0.0
      %1041 = vmatpush.msra.mxu0 0.0
      %1042 = vmatpush.msra.mxu0 0.0
      %1043 = vmatpush.msra.mxu0 0.0
      %1044 = vmatpush.msra.mxu0 0.0
      %1045 = vmatpush.msra.mxu0 0.0
      %1046 = vmatpush.msra.mxu0 0.0
      %1047 = vmatpush.msra.mxu0 0.0
      %1048 = vmatpush.msra.mxu0 0.0
      %1049 = vmatpush.msra.mxu0 0.0
      %1050 = vmatpush.msra.mxu0 0.0
      %1051 = vmatpush.msra.mxu0 0.0
      %1052 = vmatpush.msra.mxu0 0.0
      %1053 = vmatpush.msra.mxu0 0.0
      %1054 = vmatpush.msra.mxu0 0.0
      %1055 = vmatpush.msra.mxu0 %v1035
      %1056 = vmatmul.f32.gmra.mxu0 %v1038
      %v1057 = vpop.f32.mrf.mxu0
      %v1058 = vadd.f32 0.0, %v1057
      %1059 = vdwg.mxu0
      %1060 = vrot.lane.b32.xlu0 %v559, 56
      %v1061 = vpop.permute.xlu0 %1060
      %v1064 = vsel %vm564, %v981, 0
      %1066 = vmatpush.msra.mxu0 0.0
      %1067 = vmatpush.msra.mxu0 0.0
      %1068 = vmatpush.msra.mxu0 0.0
      %1069 = vmatpush.msra.mxu0 0.0
      %1070 = vmatpush.msra.mxu0 0.0
      %1071 = vmatpush.msra.mxu0 0.0
      %1072 = vmatpush.msra.mxu0 0.0
      %1073 = vmatpush.msra.mxu0 0.0
      %1074 = vmatpush.msra.mxu0 0.0
      %1075 = vmatpush.msra.mxu0 0.0
      %1076 = vmatpush.msra.mxu0 0.0
      %1077 = vmatpush.msra.mxu0 0.0
      %1078 = vmatpush.msra.mxu0 0.0
      %1079 = vmatpush.msra.mxu0 0.0
      %1080 = vmatpush.msra.mxu0 0.0
      %1081 = vmatpush.msra.mxu0 %v1061
      %1082 = vmatmul.f32.gmra.mxu0 %v1064
      %v1083 = vpop.f32.mrf.mxu0
      %v1084 = vadd.f32 0.0, %v1083
      %1085 = vdwg.mxu0
      %1086 = vrot.lane.b32.xlu0 %v550, 112
      %v1087 = vpop.permute.xlu0 %1086
      %1088 = vrot.lane.b32.xlu0 %v550, 80
      %v1089 = vpop.permute.xlu0 %1088
      %v1090 = vsel %vm564, %v1087, 0
      %v1092 = vsel %vm564, %v1089, 0
      %1094 = vmatpush.xpose.msra.mxu0 0.0
      %1095 = vmatpush.xpose.msra.mxu0 0.0
      %1096 = vmatpush.xpose.msra.mxu0 0.0
      %1097 = vmatpush.xpose.msra.mxu0 0.0
      %1098 = vmatpush.xpose.msra.mxu0 0.0
      %1099 = vmatpush.xpose.msra.mxu0 0.0
      %1100 = vmatpush.xpose.msra.mxu0 0.0
      %1101 = vmatpush.xpose.msra.mxu0 0.0
      %1102 = vmatpush.xpose.msra.mxu0 0.0
      %1103 = vmatpush.xpose.msra.mxu0 0.0
      %1104 = vmatpush.xpose.msra.mxu0 0.0
      %1105 = vmatpush.xpose.msra.mxu0 0.0
      %1106 = vmatpush.xpose.msra.mxu0 0.0
      %1107 = vmatpush.xpose.msra.mxu0 0.0
      %1108 = vmatpush.xpose.msra.mxu0 0.0
      %1109 = vmatpush.xpose.msra.mxu0 %v1092
      %1110 = vmatmul.f32.gmra.mxu0 %v1090
      %v1111 = vpop.f32.mrf.mxu0
      %v1112 = vadd.f32 0.0, %v1111
      %1113 = vdwg.mxu0
      %1114 = vrot.lane.b32.xlu0 %v553, 112
      %v1115 = vpop.permute.xlu0 %1114
      %1116 = vrot.lane.b32.xlu0 %v553, 80
      %v1117 = vpop.permute.xlu0 %1116
      %v1118 = vsel %vm564, %v1115, 0
      %v1120 = vsel %vm564, %v1117, 0
      %1122 = vmatpush.xpose.msra.mxu0 0.0
      %1123 = vmatpush.xpose.msra.mxu0 0.0
      %1124 = vmatpush.xpose.msra.mxu0 0.0
      %1125 = vmatpush.xpose.msra.mxu0 0.0
      %1126 = vmatpush.xpose.msra.mxu0 0.0
      %1127 = vmatpush.xpose.msra.mxu0 0.0
      %1128 = vmatpush.xpose.msra.mxu0 0.0
      %1129 = vmatpush.xpose.msra.mxu0 0.0
      %1130 = vmatpush.xpose.msra.mxu0 0.0
      %1131 = vmatpush.xpose.msra.mxu0 0.0
      %1132 = vmatpush.xpose.msra.mxu0 0.0
      %1133 = vmatpush.xpose.msra.mxu0 0.0
      %1134 = vmatpush.xpose.msra.mxu0 0.0
      %1135 = vmatpush.xpose.msra.mxu0 0.0
      %1136 = vmatpush.xpose.msra.mxu0 0.0
      %1137 = vmatpush.xpose.msra.mxu0 %v1120
      %1138 = vmatmul.f32.gmra.mxu0 %v1118
      %v1139 = vpop.f32.mrf.mxu0
      %v1140 = vadd.f32 0.0, %v1139
      %1141 = vdwg.mxu0
      %1142 = vrot.lane.b32.xlu0 %v556, 112
      %v1143 = vpop.permute.xlu0 %1142
      %1144 = vrot.lane.b32.xlu0 %v556, 80
      %v1145 = vpop.permute.xlu0 %1144
      %v1146 = vsel %vm564, %v1143, 0
      %v1148 = vsel %vm564, %v1145, 0
      %1150 = vmatpush.xpose.msra.mxu0 0.0
      %1151 = vmatpush.xpose.msra.mxu0 0.0
      %1152 = vmatpush.xpose.msra.mxu0 0.0
      %1153 = vmatpush.xpose.msra.mxu0 0.0
      %1154 = vmatpush.xpose.msra.mxu0 0.0
      %1155 = vmatpush.xpose.msra.mxu0 0.0
      %1156 = vmatpush.xpose.msra.mxu0 0.0
      %1157 = vmatpush.xpose.msra.mxu0 0.0
      %1158 = vmatpush.xpose.msra.mxu0 0.0
      %1159 = vmatpush.xpose.msra.mxu0 0.0
      %1160 = vmatpush.xpose.msra.mxu0 0.0
      %1161 = vmatpush.xpose.msra.mxu0 0.0
      %1162 = vmatpush.xpose.msra.mxu0 0.0
      %1163 = vmatpush.xpose.msra.mxu0 0.0
      %1164 = vmatpush.xpose.msra.mxu0 0.0
      %1165 = vmatpush.xpose.msra.mxu0 %v1148
      %1166 = vmatmul.f32.gmra.mxu0 %v1146
      %v1167 = vpop.f32.mrf.mxu0
      %v1168 = vadd.f32 0.0, %v1167
      %1169 = vdwg.mxu0
      %1170 = vrot.lane.b32.xlu0 %v559, 112
      %v1171 = vpop.permute.xlu0 %1170
      %1172 = vrot.lane.b32.xlu0 %v559, 80
      %v1173 = vpop.permute.xlu0 %1172
      %v1174 = vsel %vm564, %v1171, 0
      %v1176 = vsel %vm564, %v1173, 0
      %1178 = vmatpush.xpose.msra.mxu0 0.0
      %1179 = vmatpush.xpose.msra.mxu0 0.0
      %1180 = vmatpush.xpose.msra.mxu0 0.0
      %1181 = vmatpush.xpose.msra.mxu0 0.0
      %1182 = vmatpush.xpose.msra.mxu0 0.0
      %1183 = vmatpush.xpose.msra.mxu0 0.0
      %1184 = vmatpush.xpose.msra.mxu0 0.0
      %1185 = vmatpush.xpose.msra.mxu0 0.0
      %1186 = vmatpush.xpose.msra.mxu0 0.0
      %1187 = vmatpush.xpose.msra.mxu0 0.0
      %1188 = vmatpush.xpose.msra.mxu0 0.0
      %1189 = vmatpush.xpose.msra.mxu0 0.0
      %1190 = vmatpush.xpose.msra.mxu0 0.0
      %1191 = vmatpush.xpose.msra.mxu0 0.0
      %1192 = vmatpush.xpose.msra.mxu0 0.0
      %1193 = vmatpush.xpose.msra.mxu0 %v1176
      %1194 = vmatmul.f32.gmra.mxu0 %v1174
      %v1195 = vpop.f32.mrf.mxu0
      %v1196 = vadd.f32 0.0, %v1195
      %1197 = vdwg.mxu0
      %v1198 = vmul.f32 %v1112, 0.35355338
      %v1199 = vmul.f32 %v1140, 0.35355338
      %v1200 = vmul.f32 %v1168, 0.35355338
      %v1201 = vmul.f32 %v1196, 0.35355338
      %v1202 = vsel %vm564, %v1198, -inf
      %1203 = vmax.xlane.f32.xlu0 %v1202
      %v1204 = vpop.xlane.xlu0 %1203
      %v1205 = vsel %vm564, %v1199, -inf
      %1206 = vmax.xlane.f32.xlu0 %v1205
      %v1207 = vpop.xlane.xlu0 %1206
      %v1208 = vsel %vm564, %v1200, -inf
      %1209 = vmax.xlane.f32.xlu0 %v1208
      %v1210 = vpop.xlane.xlu0 %1209
      %v1211 = vsel %vm564, %v1201, -inf
      %1212 = vmax.xlane.f32.xlu0 %v1211
      %v1213 = vpop.xlane.xlu0 %1212
      %v1214 = vsub.f32 %v1198, %v1204
      %v1215 = vsub.f32 %v1199, %v1207
      %v1216 = vsub.f32 %v1200, %v1210
      %v1217 = vsub.f32 %v1201, %v1213
      %v1218 = vmul.f32 %v1214, 1.442695
      %v1219 = vpow.pop %v1218
      %v1220 = vmul.f32 %v1215, 1.442695
      %v1221 = vpow.pop %v1220
      %v1222 = vmul.f32 %v1216, 1.442695
      %v1223 = vpow.pop %v1222
      %v1224 = vmul.f32 %v1217, 1.442695
      %v1225 = vpow.pop %v1224
      %v1226 = vsel %vm564, %v1219, 0.0
      %1227 = vadd.xlane.f32.xlu0 %v1226
      %v1228 = vpop.xlane.xlu0 %1227
      %v1229 = vsel %vm564, %v1221, 0.0
      %1230 = vadd.xlane.f32.xlu0 %v1229
      %v1231 = vpop.xlane.xlu0 %1230
      %v1232 = vsel %vm564, %v1223, 0.0
      %1233 = vadd.xlane.f32.xlu0 %v1232
      %v1234 = vpop.xlane.xlu0 %1233
      %v1235 = vsel %vm564, %v1225, 0.0
      %1236 = vadd.xlane.f32.xlu0 %v1235
      %v1237 = vpop.xlane.xlu0 %1236
      %v1238 = vrcp.pop %v1228
      %v1239 = vrcp.pop %v1231
      %v1240 = vrcp.pop %v1234
      %v1241 = vrcp.pop %v1237
      %v1242 = vmul.f32 %v1219, %v1238
      %v1243 = vmul.f32 %v1221, %v1239
      %v1244 = vmul.f32 %v1223, %v1240
      %v1245 = vmul.f32 %v1225, %v1241
      %1246 = vrot.lane.b32.xlu0 %v550, 48
      %v1247 = vpop.permute.xlu0 %1246
      %v1250 = vsel %vm564, %v1242, 0
      %1252 = vmatpush.msra.mxu0 0.0
      %1253 = vmatpush.msra.mxu0 0.0
      %1254 = vmatpush.msra.mxu0 0.0
      %1255 = vmatpush.msra.mxu0 0.0
      %1256 = vmatpush.msra.mxu0 0.0
      %1257 = vmatpush.msra.mxu0 0.0
      %1258 = vmatpush.msra.mxu0 0.0
      %1259 = vmatpush.msra.mxu0 0.0
      %1260 = vmatpush.msra.mxu0 0.0
      %1261 = vmatpush.msra.mxu0 0.0
      %1262 = vmatpush.msra.mxu0 0.0
      %1263 = vmatpush.msra.mxu0 0.0
      %1264 = vmatpush.msra.mxu0 0.0
      %1265 = vmatpush.msra.mxu0 0.0
      %1266 = vmatpush.msra.mxu0 0.0
      %1267 = vmatpush.msra.mxu0 %v1247
      %1268 = vmatmul.f32.gmra.mxu0 %v1250
      %v1269 = vpop.f32.mrf.mxu0
      %v1270 = vadd.f32 0.0, %v1269
      %1271 = vdwg.mxu0
      %1272 = vrot.lane.b32.xlu0 %v553, 48
      %v1273 = vpop.permute.xlu0 %1272
      %v1276 = vsel %vm564, %v1243, 0
      %1278 = vmatpush.msra.mxu0 0.0
      %1279 = vmatpush.msra.mxu0 0.0
      %1280 = vmatpush.msra.mxu0 0.0
      %1281 = vmatpush.msra.mxu0 0.0
      %1282 = vmatpush.msra.mxu0 0.0
      %1283 = vmatpush.msra.mxu0 0.0
      %1284 = vmatpush.msra.mxu0 0.0
      %1285 = vmatpush.msra.mxu0 0.0
      %1286 = vmatpush.msra.mxu0 0.0
      %1287 = vmatpush.msra.mxu0 0.0
      %1288 = vmatpush.msra.mxu0 0.0
      %1289 = vmatpush.msra.mxu0 0.0
      %1290 = vmatpush.msra.mxu0 0.0
      %1291 = vmatpush.msra.mxu0 0.0
      %1292 = vmatpush.msra.mxu0 0.0
      %1293 = vmatpush.msra.mxu0 %v1273
      %1294 = vmatmul.f32.gmra.mxu0 %v1276
      %v1295 = vpop.f32.mrf.mxu0
      %v1296 = vadd.f32 0.0, %v1295
      %1297 = vdwg.mxu0
      %1298 = vrot.lane.b32.xlu0 %v556, 48
      %v1299 = vpop.permute.xlu0 %1298
      %v1302 = vsel %vm564, %v1244, 0
      %1304 = vmatpush.msra.mxu0 0.0
      %1305 = vmatpush.msra.mxu0 0.0
      %1306 = vmatpush.msra.mxu0 0.0
      %1307 = vmatpush.msra.mxu0 0.0
      %1308 = vmatpush.msra.mxu0 0.0
      %1309 = vmatpush.msra.mxu0 0.0
      %1310 = vmatpush.msra.mxu0 0.0
      %1311 = vmatpush.msra.mxu0 0.0
      %1312 = vmatpush.msra.mxu0 0.0
      %1313 = vmatpush.msra.mxu0 0.0
      %1314 = vmatpush.msra.mxu0 0.0
      %1315 = vmatpush.msra.mxu0 0.0
      %1316 = vmatpush.msra.mxu0 0.0
      %1317 = vmatpush.msra.mxu0 0.0
      %1318 = vmatpush.msra.mxu0 0.0
      %1319 = vmatpush.msra.mxu0 %v1299
      %1320 = vmatmul.f32.gmra.mxu0 %v1302
      %v1321 = vpop.f32.mrf.mxu0
      %v1322 = vadd.f32 0.0, %v1321
      %1323 = vdwg.mxu0
      %1324 = vrot.lane.b32.xlu0 %v559, 48
      %v1325 = vpop.permute.xlu0 %1324
      %v1328 = vsel %vm564, %v1245, 0
      %1330 = vmatpush.msra.mxu0 0.0
      %1331 = vmatpush.msra.mxu0 0.0
      %1332 = vmatpush.msra.mxu0 0.0
      %1333 = vmatpush.msra.mxu0 0.0
      %1334 = vmatpush.msra.mxu0 0.0
      %1335 = vmatpush.msra.mxu0 0.0
      %1336 = vmatpush.msra.mxu0 0.0
      %1337 = vmatpush.msra.mxu0 0.0
      %1338 = vmatpush.msra.mxu0 0.0
      %1339 = vmatpush.msra.mxu0 0.0
      %1340 = vmatpush.msra.mxu0 0.0
      %1341 = vmatpush.msra.mxu0 0.0
      %1342 = vmatpush.msra.mxu0 0.0
      %1343 = vmatpush.msra.mxu0 0.0
      %1344 = vmatpush.msra.mxu0 0.0
      %1345 = vmatpush.msra.mxu0 %v1325
      %1346 = vmatmul.f32.gmra.mxu0 %v1328
      %v1347 = vpop.f32.mrf.mxu0
      %v1348 = vadd.f32 0.0, %v1347
      %1349 = vdwg.mxu0
      %1350 = vrot.lane.b32.xlu0 %v550, 104
      %v1351 = vpop.permute.xlu0 %1350
      %1352 = vrot.lane.b32.xlu0 %v550, 72
      %v1353 = vpop.permute.xlu0 %1352
      %v1354 = vsel %vm564, %v1351, 0
      %v1356 = vsel %vm564, %v1353, 0
      %1358 = vmatpush.xpose.msra.mxu0 0.0
      %1359 = vmatpush.xpose.msra.mxu0 0.0
      %1360 = vmatpush.xpose.msra.mxu0 0.0
      %1361 = vmatpush.xpose.msra.mxu0 0.0
      %1362 = vmatpush.xpose.msra.mxu0 0.0
      %1363 = vmatpush.xpose.msra.mxu0 0.0
      %1364 = vmatpush.xpose.msra.mxu0 0.0
      %1365 = vmatpush.xpose.msra.mxu0 0.0
      %1366 = vmatpush.xpose.msra.mxu0 0.0
      %1367 = vmatpush.xpose.msra.mxu0 0.0
      %1368 = vmatpush.xpose.msra.mxu0 0.0
      %1369 = vmatpush.xpose.msra.mxu0 0.0
      %1370 = vmatpush.xpose.msra.mxu0 0.0
      %1371 = vmatpush.xpose.msra.mxu0 0.0
      %1372 = vmatpush.xpose.msra.mxu0 0.0
      %1373 = vmatpush.xpose.msra.mxu0 %v1356
      %1374 = vmatmul.f32.gmra.mxu0 %v1354
      %v1375 = vpop.f32.mrf.mxu0
      %v1376 = vadd.f32 0.0, %v1375
      %1377 = vdwg.mxu0
      %1378 = vrot.lane.b32.xlu0 %v553, 104
      %v1379 = vpop.permute.xlu0 %1378
      %1380 = vrot.lane.b32.xlu0 %v553, 72
      %v1381 = vpop.permute.xlu0 %1380
      %v1382 = vsel %vm564, %v1379, 0
      %v1384 = vsel %vm564, %v1381, 0
      %1386 = vmatpush.xpose.msra.mxu0 0.0
      %1387 = vmatpush.xpose.msra.mxu0 0.0
      %1388 = vmatpush.xpose.msra.mxu0 0.0
      %1389 = vmatpush.xpose.msra.mxu0 0.0
      %1390 = vmatpush.xpose.msra.mxu0 0.0
      %1391 = vmatpush.xpose.msra.mxu0 0.0
      %1392 = vmatpush.xpose.msra.mxu0 0.0
      %1393 = vmatpush.xpose.msra.mxu0 0.0
      %1394 = vmatpush.xpose.msra.mxu0 0.0
      %1395 = vmatpush.xpose.msra.mxu0 0.0
      %1396 = vmatpush.xpose.msra.mxu0 0.0
      %1397 = vmatpush.xpose.msra.mxu0 0.0
      %1398 = vmatpush.xpose.msra.mxu0 0.0
      %1399 = vmatpush.xpose.msra.mxu0 0.0
      %1400 = vmatpush.xpose.msra.mxu0 0.0
      %1401 = vmatpush.xpose.msra.mxu0 %v1384
      %1402 = vmatmul.f32.gmra.mxu0 %v1382
      %v1403 = vpop.f32.mrf.mxu0
      %v1404 = vadd.f32 0.0, %v1403
      %1405 = vdwg.mxu0
      %1406 = vrot.lane.b32.xlu0 %v556, 104
      %v1407 = vpop.permute.xlu0 %1406
      %1408 = vrot.lane.b32.xlu0 %v556, 72
      %v1409 = vpop.permute.xlu0 %1408
      %v1410 = vsel %vm564, %v1407, 0
      %v1412 = vsel %vm564, %v1409, 0
      %1414 = vmatpush.xpose.msra.mxu0 0.0
      %1415 = vmatpush.xpose.msra.mxu0 0.0
      %1416 = vmatpush.xpose.msra.mxu0 0.0
      %1417 = vmatpush.xpose.msra.mxu0 0.0
      %1418 = vmatpush.xpose.msra.mxu0 0.0
      %1419 = vmatpush.xpose.msra.mxu0 0.0
      %1420 = vmatpush.xpose.msra.mxu0 0.0
      %1421 = vmatpush.xpose.msra.mxu0 0.0
      %1422 = vmatpush.xpose.msra.mxu0 0.0
      %1423 = vmatpush.xpose.msra.mxu0 0.0
      %1424 = vmatpush.xpose.msra.mxu0 0.0
      %1425 = vmatpush.xpose.msra.mxu0 0.0
      %1426 = vmatpush.xpose.msra.mxu0 0.0
      %1427 = vmatpush.xpose.msra.mxu0 0.0
      %1428 = vmatpush.xpose.msra.mxu0 0.0
      %1429 = vmatpush.xpose.msra.mxu0 %v1412
      %1430 = vmatmul.f32.gmra.mxu0 %v1410
      %v1431 = vpop.f32.mrf.mxu0
      %v1432 = vadd.f32 0.0, %v1431
      %1433 = vdwg.mxu0
      %1434 = vrot.lane.b32.xlu0 %v559, 104
      %v1435 = vpop.permute.xlu0 %1434
      %1436 = vrot.lane.b32.xlu0 %v559, 72
      %v1437 = vpop.permute.xlu0 %1436
      %v1438 = vsel %vm564, %v1435, 0
      %v1440 = vsel %vm564, %v1437, 0
      %1442 = vmatpush.xpose.msra.mxu0 0.0
      %1443 = vmatpush.xpose.msra.mxu0 0.0
      %1444 = vmatpush.xpose.msra.mxu0 0.0
      %1445 = vmatpush.xpose.msra.mxu0 0.0
      %1446 = vmatpush.xpose.msra.mxu0 0.0
      %1447 = vmatpush.xpose.msra.mxu0 0.0
      %1448 = vmatpush.xpose.msra.mxu0 0.0
      %1449 = vmatpush.xpose.msra.mxu0 0.0
      %1450 = vmatpush.xpose.msra.mxu0 0.0
      %1451 = vmatpush.xpose.msra.mxu0 0.0
      %1452 = vmatpush.xpose.msra.mxu0 0.0
      %1453 = vmatpush.xpose.msra.mxu0 0.0
      %1454 = vmatpush.xpose.msra.mxu0 0.0
      %1455 = vmatpush.xpose.msra.mxu0 0.0
      %1456 = vmatpush.xpose.msra.mxu0 0.0
      %1457 = vmatpush.xpose.msra.mxu0 %v1440
      %1458 = vmatmul.f32.gmra.mxu0 %v1438
      %v1459 = vpop.f32.mrf.mxu0
      %v1460 = vadd.f32 0.0, %v1459
      %1461 = vdwg.mxu0
      %v1462 = vmul.f32 %v1376, 0.35355338
      %v1463 = vmul.f32 %v1404, 0.35355338
      %v1464 = vmul.f32 %v1432, 0.35355338
      %v1465 = vmul.f32 %v1460, 0.35355338
      %v1466 = vsel %vm564, %v1462, -inf
      %1467 = vmax.xlane.f32.xlu0 %v1466
      %v1468 = vpop.xlane.xlu0 %1467
      %v1469 = vsel %vm564, %v1463, -inf
      %1470 = vmax.xlane.f32.xlu0 %v1469
      %v1471 = vpop.xlane.xlu0 %1470
      %v1472 = vsel %vm564, %v1464, -inf
      %1473 = vmax.xlane.f32.xlu0 %v1472
      %v1474 = vpop.xlane.xlu0 %1473
      %v1475 = vsel %vm564, %v1465, -inf
      %1476 = vmax.xlane.f32.xlu0 %v1475
      %v1477 = vpop.xlane.xlu0 %1476
      %v1478 = vsub.f32 %v1462, %v1468
      %v1479 = vsub.f32 %v1463, %v1471
      %v1480 = vsub.f32 %v1464, %v1474
      %v1481 = vsub.f32 %v1465, %v1477
      %v1482 = vmul.f32 %v1478, 1.442695
      %v1483 = vpow.pop %v1482
      %v1484 = vmul.f32 %v1479, 1.442695
      %v1485 = vpow.pop %v1484
      %v1486 = vmul.f32 %v1480, 1.442695
      %v1487 = vpow.pop %v1486
      %v1488 = vmul.f32 %v1481, 1.442695
      %v1489 = vpow.pop %v1488
      %v1490 = vsel %vm564, %v1483, 0.0
      %1491 = vadd.xlane.f32.xlu0 %v1490
      %v1492 = vpop.xlane.xlu0 %1491
      %v1493 = vsel %vm564, %v1485, 0.0
      %1494 = vadd.xlane.f32.xlu0 %v1493
      %v1495 = vpop.xlane.xlu0 %1494
      %v1496 = vsel %vm564, %v1487, 0.0
      %1497 = vadd.xlane.f32.xlu0 %v1496
      %v1498 = vpop.xlane.xlu0 %1497
      %v1499 = vsel %vm564, %v1489, 0.0
      %1500 = vadd.xlane.f32.xlu0 %v1499
      %v1501 = vpop.xlane.xlu0 %1500
      %v1502 = vrcp.pop %v1492
      %v1503 = vrcp.pop %v1495
      %v1504 = vrcp.pop %v1498
      %v1505 = vrcp.pop %v1501
      %v1506 = vmul.f32 %v1483, %v1502
      %v1507 = vmul.f32 %v1485, %v1503
      %v1508 = vmul.f32 %v1487, %v1504
      %v1509 = vmul.f32 %v1489, %v1505
      %1510 = vrot.lane.b32.xlu0 %v550, 40
      %v1511 = vpop.permute.xlu0 %1510
      %v1514 = vsel %vm564, %v1506, 0
      %1516 = vmatpush.msra.mxu0 0.0
      %1517 = vmatpush.msra.mxu0 0.0
      %1518 = vmatpush.msra.mxu0 0.0
      %1519 = vmatpush.msra.mxu0 0.0
      %1520 = vmatpush.msra.mxu0 0.0
      %1521 = vmatpush.msra.mxu0 0.0
      %1522 = vmatpush.msra.mxu0 0.0
      %1523 = vmatpush.msra.mxu0 0.0
      %1524 = vmatpush.msra.mxu0 0.0
      %1525 = vmatpush.msra.mxu0 0.0
      %1526 = vmatpush.msra.mxu0 0.0
      %1527 = vmatpush.msra.mxu0 0.0
      %1528 = vmatpush.msra.mxu0 0.0
      %1529 = vmatpush.msra.mxu0 0.0
      %1530 = vmatpush.msra.mxu0 0.0
      %1531 = vmatpush.msra.mxu0 %v1511
      %1532 = vmatmul.f32.gmra.mxu0 %v1514
      %v1533 = vpop.f32.mrf.mxu0
      %v1534 = vadd.f32 0.0, %v1533
      %1535 = vdwg.mxu0
      %1536 = vrot.lane.b32.xlu0 %v553, 40
      %v1537 = vpop.permute.xlu0 %1536
      %v1540 = vsel %vm564, %v1507, 0
      %1542 = vmatpush.msra.mxu0 0.0
      %1543 = vmatpush.msra.mxu0 0.0
      %1544 = vmatpush.msra.mxu0 0.0
      %1545 = vmatpush.msra.mxu0 0.0
      %1546 = vmatpush.msra.mxu0 0.0
      %1547 = vmatpush.msra.mxu0 0.0
      %1548 = vmatpush.msra.mxu0 0.0
      %1549 = vmatpush.msra.mxu0 0.0
      %1550 = vmatpush.msra.mxu0 0.0
      %1551 = vmatpush.msra.mxu0 0.0
      %1552 = vmatpush.msra.mxu0 0.0
      %1553 = vmatpush.msra.mxu0 0.0
      %1554 = vmatpush.msra.mxu0 0.0
      %1555 = vmatpush.msra.mxu0 0.0
      %1556 = vmatpush.msra.mxu0 0.0
      %1557 = vmatpush.msra.mxu0 %v1537
      %1558 = vmatmul.f32.gmra.mxu0 %v1540
      %v1559 = vpop.f32.mrf.mxu0
      %v1560 = vadd.f32 0.0, %v1559
      %1561 = vdwg.mxu0
      %1562 = vrot.lane.b32.xlu0 %v556, 40
      %v1563 = vpop.permute.xlu0 %1562
      %v1566 = vsel %vm564, %v1508, 0
      %1568 = vmatpush.msra.mxu0 0.0
      %1569 = vmatpush.msra.mxu0 0.0
      %1570 = vmatpush.msra.mxu0 0.0
      %1571 = vmatpush.msra.mxu0 0.0
      %1572 = vmatpush.msra.mxu0 0.0
      %1573 = vmatpush.msra.mxu0 0.0
      %1574 = vmatpush.msra.mxu0 0.0
      %1575 = vmatpush.msra.mxu0 0.0
      %1576 = vmatpush.msra.mxu0 0.0
      %1577 = vmatpush.msra.mxu0 0.0
      %1578 = vmatpush.msra.mxu0 0.0
      %1579 = vmatpush.msra.mxu0 0.0
      %1580 = vmatpush.msra.mxu0 0.0
      %1581 = vmatpush.msra.mxu0 0.0
      %1582 = vmatpush.msra.mxu0 0.0
      %1583 = vmatpush.msra.mxu0 %v1563
      %1584 = vmatmul.f32.gmra.mxu0 %v1566
      %v1585 = vpop.f32.mrf.mxu0
      %v1586 = vadd.f32 0.0, %v1585
      %1587 = vdwg.mxu0
      %1588 = vrot.lane.b32.xlu0 %v559, 40
      %v1589 = vpop.permute.xlu0 %1588
      %v1592 = vsel %vm564, %v1509, 0
      %1594 = vmatpush.msra.mxu0 0.0
      %1595 = vmatpush.msra.mxu0 0.0
      %1596 = vmatpush.msra.mxu0 0.0
      %1597 = vmatpush.msra.mxu0 0.0
      %1598 = vmatpush.msra.mxu0 0.0
      %1599 = vmatpush.msra.mxu0 0.0
      %1600 = vmatpush.msra.mxu0 0.0
      %1601 = vmatpush.msra.mxu0 0.0
      %1602 = vmatpush.msra.mxu0 0.0
      %1603 = vmatpush.msra.mxu0 0.0
      %1604 = vmatpush.msra.mxu0 0.0
      %1605 = vmatpush.msra.mxu0 0.0
      %1606 = vmatpush.msra.mxu0 0.0
      %1607 = vmatpush.msra.mxu0 0.0
      %1608 = vmatpush.msra.mxu0 0.0
      %1609 = vmatpush.msra.mxu0 %v1589
      %1610 = vmatmul.f32.gmra.mxu0 %v1592
      %v1611 = vpop.f32.mrf.mxu0
      %v1612 = vadd.f32 0.0, %v1611
      %1613 = vdwg.mxu0
      %1618 = vrot.lane.b32.xlu0 %v1006, 8
      %v1619 = vpop.permute.xlu0 %1618
      %1620 = vrot.lane.b32.xlu0 %v1032, 8
      %v1621 = vpop.permute.xlu0 %1620
      %1622 = vrot.lane.b32.xlu0 %v1058, 8
      %v1623 = vpop.permute.xlu0 %1622
      %1624 = vrot.lane.b32.xlu0 %v1084, 8
      %v1625 = vpop.permute.xlu0 %1624
      %1634 = vrot.lane.b32.xlu0 %v1270, 16
      %v1635 = vpop.permute.xlu0 %1634
      %1636 = vrot.lane.b32.xlu0 %v1296, 16
      %v1637 = vpop.permute.xlu0 %1636
      %1638 = vrot.lane.b32.xlu0 %v1322, 16
      %v1639 = vpop.permute.xlu0 %1638
      %1640 = vrot.lane.b32.xlu0 %v1348, 16
      %v1641 = vpop.permute.xlu0 %1640
      %1650 = vrot.lane.b32.xlu0 %v1534, 24
      %v1651 = vpop.permute.xlu0 %1650
      %1652 = vrot.lane.b32.xlu0 %v1560, 24
      %v1653 = vpop.permute.xlu0 %1652
      %1654 = vrot.lane.b32.xlu0 %v1586, 24
      %v1655 = vpop.permute.xlu0 %1654
      %1656 = vrot.lane.b32.xlu0 %v1612, 24
      %v1657 = vpop.permute.xlu0 %1656
      %v1662 = vsel %vm564, %v742, %v1619
      %v1663 = vsel %vm564, %v768, %v1621
      %v1664 = vsel %vm564, %v794, %v1623
      %v1665 = vsel %vm564, %v820, %v1625
      %vm1666 = vcmask 130048
      %v1667 = vsel %vm1666, %v1662, %v1635
      %v1668 = vsel %vm1666, %v1663, %v1637
      %v1669 = vsel %vm1666, %v1664, %v1639
      %v1670 = vsel %vm1666, %v1665, %v1641
      %vm1671 = vcmask 195584
      %v1672 = vsel %vm1671, %v1667, %v1651
      %v1673 = vsel %vm1671, %v1668, %v1653
      %v1674 = vsel %vm1671, %v1669, %v1655
      %v1675 = vsel %vm1671, %v1670, %v1657
      %v1676 = vld [vmem:[%s483] sm:$0x1]
      %v1677 = vld [vmem:[%s483 + $0x1] sm:$0x1]
      %v1678 = vld [vmem:[%s465] sm:$0xff]
      %v1679 = vld [vmem:[%s465 + $0x8] sm:$0xff]
      %v1680 = vld [vmem:[%s465 + $0x10] sm:$0xff]
      %v1681 = vld [vmem:[%s465 + $0x18] sm:$0xff]
      %v1682 = vperm.slane %v1676, 0
      %v1684 = vsel %vm519, %v1672, 0
      %v1687 = vsel %vm519, %v1673, 0
      %v1690 = vsel %vm519, %v1674, 0
      %v1693 = vsel %vm519, %v1675, 0
      %1695 = vmatpush.msra.mxu0 0.0
      %1696 = vmatpush.msra.mxu0 0.0
      %1697 = vmatpush.msra.mxu0 0.0
      %1698 = vmatpush.msra.mxu0 0.0
      %1699 = vmatpush.msra.mxu0 0.0
      %1700 = vmatpush.msra.mxu0 0.0
      %1701 = vmatpush.msra.mxu0 0.0
      %1702 = vmatpush.msra.mxu0 0.0
      %1703 = vmatpush.msra.mxu0 0.0
      %1704 = vmatpush.msra.mxu0 0.0
      %1705 = vmatpush.msra.mxu0 0.0
      %1706 = vmatpush.msra.mxu0 0.0
      %1707 = vmatpush.msra.mxu0 %v1681
      %1708 = vmatpush.msra.mxu0 %v1680
      %1709 = vmatpush.msra.mxu0 %v1679
      %1710 = vmatpush.msra.mxu0 %v1678
      %1711 = vmatmul.f32.gmra.mxu0 %v1684
      %v1712 = vpop.f32.mrf.mxu0
      %v1713 = vadd.f32 %v1682, %v1712
      %1714 = vmatmul.f32.gmra.mxu0 %v1687
      %v1715 = vpop.f32.mrf.mxu0
      %v1716 = vadd.f32 %v1682, %v1715
      %1717 = vmatmul.f32.gmra.mxu0 %v1690
      %v1718 = vpop.f32.mrf.mxu0
      %v1719 = vadd.f32 %v1682, %v1718
      %1720 = vmatmul.f32.gmra.mxu0 %v1693
      %v1721 = vpop.f32.mrf.mxu0
      %v1722 = vadd.f32 %v1682, %v1721
      %1723 = vdwg.mxu0
      %v1724 = vld [vmem:[%s479] sm:$0x3f]
      %v1725 = vadd.f32 %v1713, %v511
      %v1726 = vadd.f32 %v1716, %v512
      %v1727 = vadd.f32 %v1719, %v513
      %v1728 = vadd.f32 %v1722, %v514
      %v1729 = vsel %vm519, %v1725, 0.0
      %1730 = vadd.xlane.f32.xlu0 %v1729
      %v1731 = vpop.xlane.xlu0 %1730
      %v1732 = vsel %vm519, %v1726, 0.0
      %1733 = vadd.xlane.f32.xlu0 %v1732
      %v1734 = vpop.xlane.xlu0 %1733
      %v1735 = vsel %vm519, %v1727, 0.0
      %1736 = vadd.xlane.f32.xlu0 %v1735
      %v1737 = vpop.xlane.xlu0 %1736
      %v1738 = vsel %vm519, %v1728, 0.0
      %1739 = vadd.xlane.f32.xlu0 %v1738
      %v1740 = vpop.xlane.xlu0 %1739
      %v1741 = vrcp.pop 32.0
      %v1742 = vmul.f32 32.0, %v1741
      %v1743 = vsub.f32 1.0, %v1742
      %v1744 = vmul.f32 %v1741, %v1743
      %v1745 = vadd.f32 %v1741, %v1744
      %vm1746 = vweird.f32 %v1741
      %v1747 = vsel %vm1746, %v1741, %v1745
      %v1748 = vmul.f32 %v1731, %v1747
      %v1749 = vmul.f32 %v1734, %v1747
      %v1750 = vmul.f32 %v1737, %v1747
      %v1751 = vmul.f32 %v1740, %v1747
      %v1752 = vsub.f32 %v1725, %v1748
      %v1753 = vsub.f32 %v1726, %v1749
      %v1754 = vsub.f32 %v1727, %v1750
      %v1755 = vsub.f32 %v1728, %v1751
      %v1756 = vmul.f32 %v1752, %v1752
      %v1757 = vmul.f32 %v1753, %v1753
      %v1758 = vmul.f32 %v1754, %v1754
      %v1759 = vmul.f32 %v1755, %v1755
      %v1760 = vsel %vm519, %v1756, 0.0
      %1761 = vadd.xlane.f32.xlu0 %v1760
      %v1762 = vpop.xlane.xlu0 %1761
      %v1763 = vsel %vm519, %v1757, 0.0
      %1764 = vadd.xlane.f32.xlu0 %v1763
      %v1765 = vpop.xlane.xlu0 %1764
      %v1766 = vsel %vm519, %v1758, 0.0
      %1767 = vadd.xlane.f32.xlu0 %v1766
      %v1768 = vpop.xlane.xlu0 %1767
      %v1769 = vsel %vm519, %v1759, 0.0
      %1770 = vadd.xlane.f32.xlu0 %v1769
      %v1771 = vpop.xlane.xlu0 %1770
      %v1772 = vmul.f32 %v1762, %v1747
      %v1773 = vmul.f32 %v1765, %v1747
      %v1774 = vmul.f32 %v1768, %v1747
      %v1775 = vmul.f32 %v1771, %v1747
      %v1776 = vadd.f32 %v1772, 1e-05
      %v1777 = vadd.f32 %v1773, 1e-05
      %v1778 = vadd.f32 %v1774, 1e-05
      %v1779 = vadd.f32 %v1775, 1e-05
      %v1780 = vrsqrt.pop %v1776
      %v1781 = vmul.f32 %v1780, %v1776
      %v1782 = vmul.f32 %v1781, %v1780
      %v1783 = vmul.f32 0.5, %v1782
      %v1784 = vsub.f32 1.5, %v1783
      %v1785 = vmul.f32 %v1780, %v1784
      %vm1786 = vweird.f32 %v1776
      %vm1787 = vweird.f32 %v1780
      %vm1788 = vmor %vm1786, %vm1787
      %v1789 = vsel %vm1788, %v1780, %v1785
      %v1790 = vrsqrt.pop %v1777
      %v1791 = vmul.f32 %v1790, %v1777
      %v1792 = vmul.f32 %v1791, %v1790
      %v1793 = vmul.f32 0.5, %v1792
      %v1794 = vsub.f32 1.5, %v1793
      %v1795 = vmul.f32 %v1790, %v1794
      %vm1796 = vweird.f32 %v1777
      %vm1797 = vweird.f32 %v1790
      %vm1798 = vmor %vm1796, %vm1797
      %v1799 = vsel %vm1798, %v1790, %v1795
      %v1800 = vrsqrt.pop %v1778
      %v1801 = vmul.f32 %v1800, %v1778
      %v1802 = vmul.f32 %v1801, %v1800
      %v1803 = vmul.f32 0.5, %v1802
      %v1804 = vsub.f32 1.5, %v1803
      %v1805 = vmul.f32 %v1800, %v1804
      %vm1806 = vweird.f32 %v1778
      %vm1807 = vweird.f32 %v1800
      %vm1808 = vmor %vm1806, %vm1807
      %v1809 = vsel %vm1808, %v1800, %v1805
      %v1810 = vrsqrt.pop %v1779
      %v1811 = vmul.f32 %v1810, %v1779
      %v1812 = vmul.f32 %v1811, %v1810
      %v1813 = vmul.f32 0.5, %v1812
      %v1814 = vsub.f32 1.5, %v1813
      %v1815 = vmul.f32 %v1810, %v1814
      %vm1816 = vweird.f32 %v1779
      %vm1817 = vweird.f32 %v1810
      %vm1818 = vmor %vm1816, %vm1817
      %v1819 = vsel %vm1818, %v1810, %v1815
      %v1820 = vmul.f32 %v1752, %v1789
      %v1821 = vmul.f32 %v1753, %v1799
      %v1822 = vmul.f32 %v1754, %v1809
      %v1823 = vmul.f32 %v1755, %v1819
      %v1824 = vperm.slane %v1724, 0
      %v1825 = vmul.f32 %v1820, %v1824
      %v1826 = vmul.f32 %v1821, %v1824
      %v1827 = vmul.f32 %v1822, %v1824
      %v1828 = vmul.f32 %v1823, %v1824
      %v1829 = vperm.slane %v1724, 1
      %v1830 = vadd.f32 %v1825, %v1829
      %v1831 = vadd.f32 %v1826, %v1829
      %v1832 = vadd.f32 %v1827, %v1829
      %v1833 = vadd.f32 %v1828, %v1829
      %v1834 = vld [vmem:[%s470] sm:$0xff]
      %v1835 = vld [vmem:[%s470 + $0x8] sm:$0xff]
      %v1836 = vld [vmem:[%s470 + $0x10] sm:$0xff]
      %v1837 = vld [vmem:[%s470 + $0x18] sm:$0xff]
      %v1838 = vld [vmem:[%s486] sm:$0x1]
      %v1840 = vperm.slane %v1838, 0
      %v1843 = vsel %vm519, %v1830, 0
      %v1846 = vsel %vm519, %v1831, 0
      %v1849 = vsel %vm519, %v1832, 0
      %v1852 = vsel %vm519, %v1833, 0
      %1854 = vmatpush.msra.mxu0 0.0
      %1855 = vmatpush.msra.mxu0 0.0
      %1856 = vmatpush.msra.mxu0 0.0
      %1857 = vmatpush.msra.mxu0 0.0
      %1858 = vmatpush.msra.mxu0 0.0
      %1859 = vmatpush.msra.mxu0 0.0
      %1860 = vmatpush.msra.mxu0 0.0
      %1861 = vmatpush.msra.mxu0 0.0
      %1862 = vmatpush.msra.mxu0 0.0
      %1863 = vmatpush.msra.mxu0 0.0
      %1864 = vmatpush.msra.mxu0 0.0
      %1865 = vmatpush.msra.mxu0 0.0
      %1866 = vmatpush.msra.mxu0 %v1837
      %1867 = vmatpush.msra.mxu0 %v1836
      %1868 = vmatpush.msra.mxu0 %v1835
      %1869 = vmatpush.msra.mxu0 %v1834
      %1870 = vmatmul.f32.gmra.mxu0 %v1843
      %v1871 = vpop.f32.mrf.mxu0
      %v1872 = vadd.f32 %v1840, %v1871
      %1873 = vmatmul.f32.gmra.mxu0 %v1846
      %v1874 = vpop.f32.mrf.mxu0
      %v1875 = vadd.f32 %v1840, %v1874
      %1876 = vmatmul.f32.gmra.mxu0 %v1849
      %v1877 = vpop.f32.mrf.mxu0
      %v1878 = vadd.f32 %v1840, %v1877
      %1879 = vmatmul.f32.gmra.mxu0 %v1852
      %v1880 = vpop.f32.mrf.mxu0
      %v1881 = vadd.f32 %v1840, %v1880
      %1882 = vdwg.mxu0
      %v1883 = vmax.f32 %v1872, 0.0
      %v1884 = vmax.f32 %v1875, 0.0
      %v1885 = vmax.f32 %v1878, 0.0
      %v1886 = vmax.f32 %v1881, 0.0
      %v1887 = vld [vmem:[%s475] sm:$0xff]
      %v1888 = vld [vmem:[%s475 + $0x8] sm:$0xff]
      %v1889 = vld [vmem:[%s475 + $0x10] sm:$0xff]
      %v1890 = vld [vmem:[%s475 + $0x18] sm:$0xff]
      %v1891 = vld [vmem:[%s475 + $0x20] sm:$0xff]
      %v1892 = vld [vmem:[%s475 + $0x28] sm:$0xff]
      %v1893 = vld [vmem:[%s475 + $0x30] sm:$0xff]
      %v1894 = vld [vmem:[%s475 + $0x38] sm:$0xff]
      %v1895 = vperm.slane %v1677, 0
      %vm1896 = vcmask 523264
      %v1898 = vsel %vm1896, %v1883, 0
      %v1901 = vsel %vm1896, %v1884, 0
      %v1904 = vsel %vm1896, %v1885, 0
      %v1907 = vsel %vm1896, %v1886, 0
      %1909 = vmatpush.msra.mxu0 0.0
      %1910 = vmatpush.msra.mxu0 0.0
      %1911 = vmatpush.msra.mxu0 0.0
      %1912 = vmatpush.msra.mxu0 0.0
      %1913 = vmatpush.msra.mxu0 0.0
      %1914 = vmatpush.msra.mxu0 0.0
      %1915 = vmatpush.msra.mxu0 0.0
      %1916 = vmatpush.msra.mxu0 0.0
      %1917 = vmatpush.msra.mxu0 %v1894
      %1918 = vmatpush.msra.mxu0 %v1893
      %1919 = vmatpush.msra.mxu0 %v1892
      %1920 = vmatpush.msra.mxu0 %v1891
      %1921 = vmatpush.msra.mxu0 %v1890
      %1922 = vmatpush.msra.mxu0 %v1889
      %1923 = vmatpush.msra.mxu0 %v1888
      %1924 = vmatpush.msra.mxu0 %v1887
      %1925 = vmatmul.f32.gmra.mxu0 %v1898
      %v1926 = vpop.f32.mrf.mxu0
      %v1927 = vadd.f32 %v1895, %v1926
      %1928 = vmatmul.f32.gmra.mxu0 %v1901
      %v1929 = vpop.f32.mrf.mxu0
      %v1930 = vadd.f32 %v1895, %v1929
      %1931 = vmatmul.f32.gmra.mxu0 %v1904
      %v1932 = vpop.f32.mrf.mxu0
      %v1933 = vadd.f32 %v1895, %v1932
      %1934 = vmatmul.f32.gmra.mxu0 %v1907
      %v1935 = vpop.f32.mrf.mxu0
      %v1936 = vadd.f32 %v1895, %v1935
      %1937 = vdwg.mxu0
      %v1938 = vadd.f32 %v1927, %v1830
      %v1939 = vadd.f32 %v1930, %v1831
      %v1940 = vadd.f32 %v1933, %v1832
      %v1941 = vadd.f32 %v1936, %v1833
      %v1942 = vsel %vm519, %v1938, 0.0
      %1943 = vadd.xlane.f32.xlu0 %v1942
      %v1944 = vpop.xlane.xlu0 %1943
      %v1945 = vsel %vm519, %v1939, 0.0
      %1946 = vadd.xlane.f32.xlu0 %v1945
      %v1947 = vpop.xlane.xlu0 %1946
      %v1948 = vsel %vm519, %v1940, 0.0
      %1949 = vadd.xlane.f32.xlu0 %v1948
      %v1950 = vpop.xlane.xlu0 %1949
      %v1951 = vsel %vm519, %v1941, 0.0
      %1952 = vadd.xlane.f32.xlu0 %v1951
      %v1953 = vpop.xlane.xlu0 %1952
      %v1954 = vmul.f32 %v1944, %v1747
      %v1955 = vmul.f32 %v1947, %v1747
      %v1956 = vmul.f32 %v1950, %v1747
      %v1957 = vmul.f32 %v1953, %v1747
      %v1958 = vsub.f32 %v1938, %v1954
      %v1959 = vsub.f32 %v1939, %v1955
      %v1960 = vsub.f32 %v1940, %v1956
      %v1961 = vsub.f32 %v1941, %v1957
      %v1962 = vmul.f32 %v1958, %v1958
      %v1963 = vmul.f32 %v1959, %v1959
      %v1964 = vmul.f32 %v1960, %v1960
      %v1965 = vmul.f32 %v1961, %v1961
      %v1966 = vsel %vm519, %v1962, 0.0
      %1967 = vadd.xlane.f32.xlu0 %v1966
      %v1968 = vpop.xlane.xlu0 %1967
      %v1969 = vsel %vm519, %v1963, 0.0
      %1970 = vadd.xlane.f32.xlu0 %v1969
      %v1971 = vpop.xlane.xlu0 %1970
      %v1972 = vsel %vm519, %v1964, 0.0
      %1973 = vadd.xlane.f32.xlu0 %v1972
      %v1974 = vpop.xlane.xlu0 %1973
      %v1975 = vsel %vm519, %v1965, 0.0
      %1976 = vadd.xlane.f32.xlu0 %v1975
      %v1977 = vpop.xlane.xlu0 %1976
      %v1978 = vmul.f32 %v1968, %v1747
      %v1979 = vmul.f32 %v1971, %v1747
      %v1980 = vmul.f32 %v1974, %v1747
      %v1981 = vmul.f32 %v1977, %v1747
      %v1982 = vadd.f32 %v1978, 1e-05
      %v1983 = vadd.f32 %v1979, 1e-05
      %v1984 = vadd.f32 %v1980, 1e-05
      %v1985 = vadd.f32 %v1981, 1e-05
      %v1986 = vrsqrt.pop %v1982
      %v1987 = vmul.f32 %v1986, %v1982
      %v1988 = vmul.f32 %v1987, %v1986
      %v1989 = vmul.f32 0.5, %v1988
      %v1990 = vsub.f32 1.5, %v1989
      %v1991 = vmul.f32 %v1986, %v1990
      %vm1992 = vweird.f32 %v1982
      %vm1993 = vweird.f32 %v1986
      %vm1994 = vmor %vm1992, %vm1993
      %v1995 = vsel %vm1994, %v1986, %v1991
      %v1996 = vrsqrt.pop %v1983
      %v1997 = vmul.f32 %v1996, %v1983
      %v1998 = vmul.f32 %v1997, %v1996
      %v1999 = vmul.f32 0.5, %v1998
      %v2000 = vsub.f32 1.5, %v1999
      %v2001 = vmul.f32 %v1996, %v2000
      %vm2002 = vweird.f32 %v1983
      %vm2003 = vweird.f32 %v1996
      %vm2004 = vmor %vm2002, %vm2003
      %v2005 = vsel %vm2004, %v1996, %v2001
      %v2006 = vrsqrt.pop %v1984
      %v2007 = vmul.f32 %v2006, %v1984
      %v2008 = vmul.f32 %v2007, %v2006
      %v2009 = vmul.f32 0.5, %v2008
      %v2010 = vsub.f32 1.5, %v2009
      %v2011 = vmul.f32 %v2006, %v2010
      %vm2012 = vweird.f32 %v1984
      %vm2013 = vweird.f32 %v2006
      %vm2014 = vmor %vm2012, %vm2013
      %v2015 = vsel %vm2014, %v2006, %v2011
      %v2016 = vrsqrt.pop %v1985
      %v2017 = vmul.f32 %v2016, %v1985
      %v2018 = vmul.f32 %v2017, %v2016
      %v2019 = vmul.f32 0.5, %v2018
      %v2020 = vsub.f32 1.5, %v2019
      %v2021 = vmul.f32 %v2016, %v2020
      %vm2022 = vweird.f32 %v1985
      %vm2023 = vweird.f32 %v2016
      %vm2024 = vmor %vm2022, %vm2023
      %v2025 = vsel %vm2024, %v2016, %v2021
      %v2026 = vmul.f32 %v1958, %v1995
      %v2027 = vmul.f32 %v1959, %v2005
      %v2028 = vmul.f32 %v1960, %v2015
      %v2029 = vmul.f32 %v1961, %v2025
      %v2030 = vperm.slane %v1724, 2
      %v2031 = vmul.f32 %v2026, %v2030
      %v2032 = vmul.f32 %v2027, %v2030
      %v2033 = vmul.f32 %v2028, %v2030
      %v2034 = vmul.f32 %v2029, %v2030
      %v2035 = vperm.slane %v1724, 3
      %v2036 = vadd.f32 %v2031, %v2035
      %v2037 = vadd.f32 %v2032, %v2035
      %v2038 = vadd.f32 %v2033, %v2035
      %v2039 = vadd.f32 %v2034, %v2035
      %v2040 = vadd.f32 %v2036, %v506
      %v2041 = vadd.f32 %v2037, %v507
      %v2042 = vadd.f32 %v2038, %v508
      %v2043 = vadd.f32 %v2039, %v509
      %v2044 = vsel %vm519, %v2040, 0.0
      %2045 = vadd.xlane.f32.xlu0 %v2044
      %v2046 = vpop.xlane.xlu0 %2045
      %v2047 = vsel %vm519, %v2041, 0.0
      %2048 = vadd.xlane.f32.xlu0 %v2047
      %v2049 = vpop.xlane.xlu0 %2048
      %v2050 = vsel %vm519, %v2042, 0.0
      %2051 = vadd.xlane.f32.xlu0 %v2050
      %v2052 = vpop.xlane.xlu0 %2051
      %v2053 = vsel %vm519, %v2043, 0.0
      %2054 = vadd.xlane.f32.xlu0 %v2053
      %v2055 = vpop.xlane.xlu0 %2054
      %v2056 = vmul.f32 %v2046, %v1747
      %v2057 = vmul.f32 %v2049, %v1747
      %v2058 = vmul.f32 %v2052, %v1747
      %v2059 = vmul.f32 %v2055, %v1747
      %v2060 = vsub.f32 %v2040, %v2056
      %v2061 = vsub.f32 %v2041, %v2057
      %v2062 = vsub.f32 %v2042, %v2058
      %v2063 = vsub.f32 %v2043, %v2059
      %v2064 = vmul.f32 %v2060, %v2060
      %v2065 = vmul.f32 %v2061, %v2061
      %v2066 = vmul.f32 %v2062, %v2062
      %v2067 = vmul.f32 %v2063, %v2063
      %v2068 = vsel %vm519, %v2064, 0.0
      %2069 = vadd.xlane.f32.xlu0 %v2068
      %v2070 = vpop.xlane.xlu0 %2069
      %v2071 = vsel %vm519, %v2065, 0.0
      %2072 = vadd.xlane.f32.xlu0 %v2071
      %v2073 = vpop.xlane.xlu0 %2072
      %v2074 = vsel %vm519, %v2066, 0.0
      %2075 = vadd.xlane.f32.xlu0 %v2074
      %v2076 = vpop.xlane.xlu0 %2075
      %v2077 = vsel %vm519, %v2067, 0.0
      %2078 = vadd.xlane.f32.xlu0 %v2077
      %v2079 = vpop.xlane.xlu0 %2078
      %v2080 = vmul.f32 %v2070, %v1747
      %v2081 = vmul.f32 %v2073, %v1747
      %v2082 = vmul.f32 %v2076, %v1747
      %v2083 = vmul.f32 %v2079, %v1747
      %v2084 = vadd.f32 %v2080, 1e-05
      %v2085 = vadd.f32 %v2081, 1e-05
      %v2086 = vadd.f32 %v2082, 1e-05
      %v2087 = vadd.f32 %v2083, 1e-05
      %v2088 = vrsqrt.pop %v2084
      %v2089 = vmul.f32 %v2088, %v2084
      %v2090 = vmul.f32 %v2089, %v2088
      %v2091 = vmul.f32 0.5, %v2090
      %v2092 = vsub.f32 1.5, %v2091
      %v2093 = vmul.f32 %v2088, %v2092
      %vm2094 = vweird.f32 %v2084
      %vm2095 = vweird.f32 %v2088
      %vm2096 = vmor %vm2094, %vm2095
      %v2097 = vsel %vm2096, %v2088, %v2093
      %v2098 = vrsqrt.pop %v2085
      %v2099 = vmul.f32 %v2098, %v2085
      %v2100 = vmul.f32 %v2099, %v2098
      %v2101 = vmul.f32 0.5, %v2100
      %v2102 = vsub.f32 1.5, %v2101
      %v2103 = vmul.f32 %v2098, %v2102
      %vm2104 = vweird.f32 %v2085
      %vm2105 = vweird.f32 %v2098
      %vm2106 = vmor %vm2104, %vm2105
      %v2107 = vsel %vm2106, %v2098, %v2103
      %v2108 = vrsqrt.pop %v2086
      %v2109 = vmul.f32 %v2108, %v2086
      %v2110 = vmul.f32 %v2109, %v2108
      %v2111 = vmul.f32 0.5, %v2110
      %v2112 = vsub.f32 1.5, %v2111
      %v2113 = vmul.f32 %v2108, %v2112
      %vm2114 = vweird.f32 %v2086
      %vm2115 = vweird.f32 %v2108
      %vm2116 = vmor %vm2114, %vm2115
      %v2117 = vsel %vm2116, %v2108, %v2113
      %v2118 = vrsqrt.pop %v2087
      %v2119 = vmul.f32 %v2118, %v2087
      %v2120 = vmul.f32 %v2119, %v2118
      %v2121 = vmul.f32 0.5, %v2120
      %v2122 = vsub.f32 1.5, %v2121
      %v2123 = vmul.f32 %v2118, %v2122
      %vm2124 = vweird.f32 %v2087
      %vm2125 = vweird.f32 %v2118
      %vm2126 = vmor %vm2124, %vm2125
      %v2127 = vsel %vm2126, %v2118, %v2123
      %v2128 = vmul.f32 %v2060, %v2097
      %v2129 = vmul.f32 %v2061, %v2107
      %v2130 = vmul.f32 %v2062, %v2117
      %v2131 = vmul.f32 %v2063, %v2127
      %v2132 = vperm.slane %v1724, 4
      %v2133 = vmul.f32 %v2128, %v2132
      %v2134 = vmul.f32 %v2129, %v2132
      %v2135 = vmul.f32 %v2130, %v2132
      %v2136 = vmul.f32 %v2131, %v2132
      %v2137 = vperm.slane %v1724, 5
      %v2138 = vadd.f32 %v2133, %v2137
      %v2139 = vadd.f32 %v2134, %v2137
      %v2140 = vadd.f32 %v2135, %v2137
      %v2141 = vadd.f32 %v2136, %v2137
      %2142 = vst.msk [vmem:[%s491] sm:$0xff] %vm519, %v2138
      %2143 = vst.msk [vmem:[%s491 + $0x8] sm:$0xff] %vm519, %v2139
      %2144 = vst.msk [vmem:[%s491 + $0x10] sm:$0xff] %vm519, %v2140
      %2145 = vst.msk [vmem:[%s491 + $0x18] sm:$0xff] %vm519, %v2141
      %s2146 = smul.u32 4, %s24
      %p2147 = scmp.lt.s32.totalorder %s2146, 7
      %s2148 = scalar_select %p2147, %s2146, 7
      %s2149 = smul.addr %s2148, 8
      %s2150 = scalar_lea.vmem %s9, %s2149
      // Predicated region
      $region61: #{tpu_custom_call.1} parent=55 // pred_check
        %p2151 = pneg %p284
      $region62: #{tpu_custom_call.1} parent=55 // pred_check_branch
        %2153 = sbr.rel (%p2151) target = $region64
      $region63: #{tpu_custom_call.1} parent=55 // pred_region
        %s2154 = smul.u32 4, %s24
      $region64: #{tpu_custom_call.1} parent=55 // pred_fallthru
        _
    $region56: #{tpu_custom_call.1} parent=5 // pred_fallthru
      _
    %p2155 = scmp.le.s32.totalorder 2, %s15
    // Predicated region
    $region65: #{tpu_custom_call.1} parent=5 // pred_check
      %p2156 = pneg %p2155
    $region66: #{tpu_custom_call.1} parent=5 // pred_check_branch
      %2158 = sbr.rel (%p2156) target = $region68
    $region67: #{tpu_custom_call.1} parent=5 // pred_region
      %s2159 = ssub.s32 %s15, 2
      // Predicated region
      $region69: #{tpu_custom_call.1} parent=67 // pred_check
        %p2160 = pneg %p290
      $region70: #{tpu_custom_call.1} parent=67 // pred_check_branch
        %2162 = sbr.rel (%p2160) target = $region72
      $region71: #{tpu_custom_call.1} parent=67 // pred_region
        %s2163 = smul.u32 4, %s26
        %p2164 = scmp.lt.s32.totalorder %s2163, 7
        %s2165 = scalar_select %p2164, %s2163, 7
        %s2166 = smul.addr %s2165, 8
        %s2167 = scalar_lea.vmem %s9, %s2166
      $region72: #{tpu_custom_call.1} parent=67 // pred_fallthru
        _
    $region68: #{tpu_custom_call.1} parent=5 // pred_fallthru
      _
  $region6: #{tpu_custom_call.1} parent=0 // loop_footer
    %s19 = sadd.s32 1, %s15
  $region7: #{tpu_custom_call.1} parent=0 // loop_footer_branch
    %14 = sbr.rel target = $region3
  $region8: #{tpu_custom_call.1} parent=0 // loop_exit
    _

</llo_original>
